<compile_context>
chip_gen: v7x
topology: tpu7x:2x2x1
jax: 0.10.0
libtpu: 0.0.40
codegen_flags: <defaults>
</compile_context>

<pallas_src>
import numpy as np
import jax
import jax.numpy as jnp
from jax import lax
from jax.experimental import pallas as pl
from jax.experimental.pallas import tpu as pltpu


# ------------------------------------------------------------------
# Host-side parameter construction (deterministic numpy).
# ------------------------------------------------------------------
def build_filters(seq_len, fs, f_mean, bandwidth, shape, group_delay,
                  clamp_f_mean=(1.0, 45.0)):
    """Filter-major (n_filters, T//2+1) real / imag responses.

    The PyTorch module repeats the F filter parameters per electrode
    (channel c uses filter c % F), so one row per filter is the dedup."""
    half = fs / 2.0
    k = np.fft.fftfreq(seq_len, d=1.0 / fs)[: seq_len // 2]
    n_range = np.concatenate([k, [half]]) / half                      # (T//2+1,)

    fm = np.clip(np.array(f_mean, np.float64) / half,
                 clamp_f_mean[0] / half, clamp_f_mean[1] / half)      # (F,)
    bw = np.clip(np.array(bandwidth, np.float64) / half, 1.0 / half, 1.0)
    sh = np.clip(np.array(shape, np.float64), 2.0, 3.0)
    gd = np.array(group_delay, np.float64) / 1000.0

    se = (sh * 8.0 - 14.0)[:, None]                                   # shape*8-14
    scale = bw[:, None] / (2.0 * np.log(2.0) ** (1.0 / se))
    mag = np.exp(-(((np.abs(n_range[None, :] - fm[:, None])) + 1e-8) / scale) ** se)
    mag = mag / mag.max(axis=-1, keepdims=True)                       # (F, T//2+1)

    f = np.linspace(0.0, fs, seq_len // 2 + 1)[None, :]
    pha = -gd[:, None] * f * np.pi
    real = mag * np.cos(pha)
    imag = mag * np.sin(pha)
    return real.astype(np.float32), imag.astype(np.float32)


def build_selection(n_filters, n_electrodes):
    """One-hot selectors mapping the packed (F*E, F*E) correlation matrix to the
    PyTorch feature order k = p*F + f (pair-major, filter-minor).

    asel[r, k] = 1  iff r = f*E + iu[p]   (row of the wanted entry)
    bsel[c, k] = 1  iff c = f*E + ju[p]   (col of the wanted entry)
    """
    F, E = n_filters, n_electrodes
    P = E * (E - 1) // 2
    NF = P * F
    iu, ju = np.triu_indices(E, k=1)
    asel = np.zeros((F * E, NF), np.float32)
    bsel = np.zeros((F * E, NF), np.float32)
    for p in range(P):
        for f in range(F):
            k = p * F + f
            asel[f * E + iu[p], k] = 1.0
            bsel[f * E + ju[p], k] = 1.0
    return asel, bsel


def _vmem_limit(block_bytes):
    """Explicit VMEM budget: double-buffered blocks + headroom, capped for v7x."""
    return int(min(max(32 * 1024 * 1024, 4 * block_bytes + 8 * 1024 * 1024),
                   64 * 1024 * 1024))


# ------------------------------------------------------------------
# Kernel 1: spectral filter application.
# real*real_filter and imag*imag_filter independently (component-wise product on
# the view_as_real representation — exactly what the PyTorch module does; it is
# NOT a complex multiply).  One broadcast multiply + one aligned store per output.
# ------------------------------------------------------------------
def _spectral_kernel(xr_ref, xi_ref, fr_ref, fi_ref, yr_ref, yi_ref):
    xr = xr_ref[0]                               # (E, Fr)
    xi = xi_ref[0]                               # (E, Fr)
    fr = fr_ref[...]                             # (F, Fr)
    fi = fi_ref[...]                             # (F, Fr)
    yr_ref[0] = xr[None, :, :] * fr[:, None, :]  # (F, E, Fr) single store
    yi_ref[0] = xi[None, :, :] * fi[:, None, :]


def spectral_multiply(xr, xi, fr, fi):
    """xr, xi: (B, E, Fr); fr, fi: (F, Fr) -> two (B, F, E, Fr) arrays."""
    B, E, Fr = xr.shape
    F = fr.shape[0]
    blk = 4 * (2 * E * Fr + 2 * F * Fr + 2 * F * E * Fr)
    return pl.pallas_call(
        _spectral_kernel,
        out_shape=(jax.ShapeDtypeStruct((B, F, E, Fr), jnp.float32),
                   jax.ShapeDtypeStruct((B, F, E, Fr), jnp.float32)),
        grid=(B,),
        in_specs=[pl.BlockSpec((1, E, Fr), lambda b: (b, 0, 0)),
                  pl.BlockSpec((1, E, Fr), lambda b: (b, 0, 0)),
                  pl.BlockSpec((F, Fr), lambda b: (0, 0)),
                  pl.BlockSpec((F, Fr), lambda b: (0, 0))],
        out_specs=(pl.BlockSpec((1, F, E, Fr), lambda b: (b, 0, 0, 0)),
                   pl.BlockSpec((1, F, E, Fr), lambda b: (b, 0, 0, 0))),
        compiler_params=pltpu.CompilerParams(
            dimension_semantics=("parallel",),
            vmem_limit_bytes=_vmem_limit(blk)),
    )(xr, xi, fr, fi)


# ------------------------------------------------------------------
# Kernel 2: packed correlation + lane-dense feature extraction.
# Per batch: center rows (f32), one NT matmul of the whole (F*E, T) slab with
# bf16 operands / f32 accumulate, rsqrt-based normalization applied AFTER the
# matmul and only to the n_features entries that are emitted.  The upper-triangle
# entries (PyTorch order k = p*F + f) are picked with exact one-hot selector
# matmuls and written as one lane-dense (1, n_features) row.
# ------------------------------------------------------------------
def correlation_features(y, asel, bsel, mxu_bf16=True):
    """y: (B, F*E, T) filter-major rows (row = f*E + e).
    asel/bsel: (F*E, NF) one-hot selectors.  Returns (B, NF) features."""
    B, R, T = y.shape
    NF = asel.shape[1]
    mxu_dtype = jnp.bfloat16 if mxu_bf16 else jnp.float32

    def kernel(x_ref, a_ref, b_ref, o_ref):
        x = x_ref[0]                                               # (R, T)
        mean = jnp.mean(x, axis=-1, keepdims=True)                 # f32 stats
        xc = x - mean
        var = jnp.sum(xc * xc, axis=-1, keepdims=True) * (1.0 / (T - 1))
        inv = lax.rsqrt(var + 1e-6)                                # (R, 1), EUP
        xm = xc.astype(mxu_dtype)                                  # MXU operands
        raw = lax.dot_general(xm, xm, (((1,), (1,)), ((), ())),
                              preferred_element_type=jnp.float32)  # (R, R) f32
        a = a_ref[...]                                             # (R, NF)
        bs = b_ref[...]                                            # (R, NF)
        # One-hot selection is exact in f32: rb[r, k] = raw[r, c_k]
        rb = jnp.dot(raw, bs, preferred_element_type=jnp.float32)  # (R, NF)
        v = jnp.sum(a * rb, axis=0, keepdims=True)                 # (1, NF) raw[r_k, c_k]
        ia = jnp.sum(a * inv, axis=0, keepdims=True)               # (1, NF) inv[r_k]
        ib = jnp.sum(bs * inv, axis=0, keepdims=True)              # (1, NF) inv[c_k]
        o_ref[0] = jnp.abs(v) * ia * ib * (1.0 / T)                # lane-dense row

    blk = 4 * (R * T + 2 * R * NF + R * R + NF)
    out = pl.pallas_call(
        kernel,
        out_shape=jax.ShapeDtypeStruct((B, 1, NF), jnp.float32),
        grid=(B,),
        in_specs=[pl.BlockSpec((1, R, T), lambda b: (b, 0, 0)),
                  pl.BlockSpec((R, NF), lambda b: (0, 0)),
                  pl.BlockSpec((R, NF), lambda b: (0, 0))],
        out_specs=pl.BlockSpec((1, 1, NF), lambda b: (b, 0, 0)),
        compiler_params=pltpu.CompilerParams(
            dimension_semantics=("parallel",),
            vmem_limit_bytes=_vmem_limit(blk)),
    )(y, asel, bsel)
    return out.reshape(B, NF)


# ------------------------------------------------------------------
# Kernel 3: BatchNorm1d (training-mode batch stats, affine=False, eps=1e-5)
#           + Linear (weight kept (n_out, n_features), last-axis contraction)
#           + sigmoid.  Tiny; grid=(1,).
# ------------------------------------------------------------------
def _head_kernel(f_ref, w_ref, b_ref, o_ref):
    f = f_ref[...]                                                 # (B, NF)
    mu = jnp.mean(f, axis=0, keepdims=True)
    var = jnp.mean((f - mu) * (f - mu), axis=0, keepdims=True)     # biased (BN)
    z = (f - mu) * lax.rsqrt(var + 1e-5)
    y = lax.dot_general(z, w_ref[...], (((1,), (1,)), ((), ())),
                        preferred_element_type=jnp.float32) + b_ref[...]
    o_ref[...] = jax.nn.sigmoid(y)


def head(feat, w, b):
    """feat: (B, NF); w: (NO, NF) lane-major; b: (1, NO)."""
    B, NF = feat.shape
    NO = w.shape[0]
    blk = 4 * (B * NF + NO * NF + NO + B * NO)
    return pl.pallas_call(
        _head_kernel,
        out_shape=jax.ShapeDtypeStruct((B, NO), jnp.float32),
        grid=(1,),
        in_specs=[pl.BlockSpec((B, NF), lambda i: (0, 0)),
                  pl.BlockSpec((NO, NF), lambda i: (0, 0)),
                  pl.BlockSpec((1, NO), lambda i: (0, 0))],
        out_specs=pl.BlockSpec((B, NO), lambda i: (0, 0)),
        compiler_params=pltpu.CompilerParams(
            dimension_semantics=("arbitrary",),
            vmem_limit_bytes=_vmem_limit(blk)),
    )(feat, w, b)


# ------------------------------------------------------------------
# Full forward.
# ------------------------------------------------------------------
def corr_eegminer_forward(x, filt_real, filt_imag, fc_w, fc_b, asel, bsel,
                          n_filters, mxu_bf16=True):
    """x: (batch, electrodes, time) f32.  fc_w: (n_out, n_features)."""
    B, E, T = x.shape
    F = n_filters

    # GeneralizedGaussianFilter --------------------------------------------
    X = jnp.fft.rfft(x.astype(jnp.float32), axis=-1)              # (B, E, T//2+1)
    Xr = jnp.real(X).astype(jnp.float32)
    Xi = jnp.imag(X).astype(jnp.float32)
    Yr, Yi = spectral_multiply(Xr, Xi, filt_real, filt_imag)      # (B, F, E, Fr)
    y = jnp.fft.irfft(Yr + 1j * Yi, n=T, axis=-1)                 # (B, F, E, T)
    y = y.reshape(B, F * E, T).astype(jnp.float32)                # filter-major rows

    # standardise + correlation + upper-triangle features (one kernel) ------
    feat = correlation_features(y, asel, bsel, mxu_bf16=mxu_bf16)  # (B, NF)

    # BatchNorm (batch stats) + Linear + sigmoid ----------------------------
    return head(feat, fc_w, fc_b)


# ------------------------------------------------------------------
# Pure-JAX reference mirroring the literal PyTorch graph (repeat_interleave,
# electrode-major channels, transposes, triu gather, BN, Linear, sigmoid).
# `matmul_dtype` controls the correlation-matmul operand dtype so the bf16 MXU
# path can be validated apples-to-apples; the math (normalize before vs. after
# the matmul) is identical either way.
# ------------------------------------------------------------------
def reference_forward(x, filt_real, filt_imag, fc_w, fc_b, n_filters,
                      matmul_dtype=jnp.float32):
    B, E, T = x.shape
    F = n_filters
    real_em = np.tile(np.asarray(filt_real), (E, 1))              # channel c -> filter c%F
    imag_em = np.tile(np.asarray(filt_imag), (E, 1))
    X = jnp.fft.rfft(x, axis=-1)
    Xr = jnp.repeat(jnp.real(X), F, axis=1)                       # channel c -> electrode c//F
    Xi = jnp.repeat(jnp.imag(X), F, axis=1)
    Yr = Xr * real_em[None]
    Yi = Xi * imag_em[None]
    y = jnp.fft.irfft(Yr + 1j * Yi, n=T, axis=-1)                 # (B, E*F, T)
    xf = y.reshape(B, E, F, T).transpose(0, 2, 1, 3)              # (B, F, E, T)
    mean = xf.mean(-1, keepdims=True)
    xc = xf - mean
    var = (xc ** 2).sum(-1, keepdims=True) / (T - 1)              # torch.var (unbiased)
    if matmul_dtype == jnp.float32:
        z = xc / jnp.sqrt(var + 1e-6)
        corr = jnp.abs(jnp.einsum('bfet,bfgt->bfeg', z, z,
                                  precision=lax.Precision.HIGHEST) / T)
    else:
        xm = xc.astype(matmul_dtype)
        raw = jnp.einsum('bfet,bfgt->bfeg', xm, xm,
                         preferred_element_type=jnp.float32)
        inv = lax.rsqrt(var + 1e-6)
        corr = jnp.abs(raw) * inv * jnp.swapaxes(inv, -1, -2) / T
    iu, ju = np.triu_indices(E, 1)
    feat = jnp.transpose(corr[:, :, iu, ju], (0, 2, 1)).reshape(B, -1)
    mu = feat.mean(0, keepdims=True)
    v = ((feat - mu) ** 2).mean(0, keepdims=True)
    zf = (feat - mu) / jnp.sqrt(v + 1e-5)
    logits = jnp.dot(zf, fc_w.T, precision=lax.Precision.HIGHEST) + fc_b
    return jax.nn.sigmoid(logits)


# ------------------------------------------------------------------
# Driver
# ------------------------------------------------------------------
if __name__ == "__main__":
    batch, n_electrodes, time_len = 2, 4, 16
    n_out = 3
    fs = 128
    f_mean = [23.0, 23.0]
    bandwidth = [44.0, 44.0]
    shape_p = [2.0, 2.0]
    group_delay = [20.0, 20.0]
    n_filters = len(f_mean)
    n_features = n_filters * n_electrodes * (n_electrodes - 1) // 2

    # deterministic parameters / setup tables
    filt_real_np, filt_imag_np = build_filters(
        time_len, fs, f_mean, bandwidth, shape_p, group_delay)
    filt_real = jnp.asarray(filt_real_np)                         # (F, T//2+1)
    filt_imag = jnp.asarray(filt_imag_np)
    asel_np, bsel_np = build_selection(n_filters, n_electrodes)   # (F*E, NF)
    asel = jnp.asarray(asel_np)
    bsel = jnp.asarray(bsel_np)

    key = jax.random.PRNGKey(0)
    kx, kw = jax.random.split(key)
    x = jax.random.normal(kx, (batch, n_electrodes, time_len), dtype=jnp.float32)
    bound = 1.0 / np.sqrt(n_features)
    fc_w = jax.random.uniform(kw, (n_out, n_features), jnp.float32, -bound, bound)
    fc_b = jnp.zeros((1, n_out), jnp.float32)                     # nn.init.zeros_

    fwd = jax.jit(corr_eegminer_forward,
                  static_argnames=("n_filters", "mxu_bf16"))

    # main path: bf16 MXU operands, f32 accumulation / stats
    out = jax.block_until_ready(
        fwd(x, filt_real, filt_imag, fc_w, fc_b, asel, bsel,
            n_filters=n_filters, mxu_bf16=True))
    assert out.shape == (batch, n_out)
    assert bool(jnp.all(jnp.isfinite(out)))

    ref_bf16 = jax.block_until_ready(
        reference_forward(x, filt_real, filt_imag, fc_w, fc_b, n_filters,
                          matmul_dtype=jnp.bfloat16))
    np.testing.assert_allclose(np.asarray(out), np.asarray(ref_bf16),
                               rtol=2e-3, atol=2e-3)

    # full-f32 path vs. the literal (standardize-then-matmul) reference
    out_f32 = jax.block_until_ready(
        fwd(x, filt_real, filt_imag, fc_w, fc_b, asel, bsel,
            n_filters=n_filters, mxu_bf16=False))
    ref_f32 = jax.block_until_ready(
        reference_forward(x, filt_real, filt_imag, fc_w, fc_b, n_filters,
                          matmul_dtype=jnp.float32))
    np.testing.assert_allclose(np.asarray(out_f32), np.asarray(ref_f32),
                               rtol=2e-3, atol=2e-3)

    print("KERNEL_OK")
</pallas_src>

<mosaic_0001>
module attributes {stable_mosaic.version = 11 : i64} {
  func.func @_spectral_kernel(%arg0: i32, %arg1: memref<1x4x9xf32, #tpu.memory_space<vmem>>, %arg2: memref<1x4x9xf32, #tpu.memory_space<vmem>>, %arg3: memref<2x9xf32, #tpu.memory_space<vmem>>, %arg4: memref<2x9xf32, #tpu.memory_space<vmem>>, %arg5: memref<1x2x4x9xf32, #tpu.memory_space<vmem>>, %arg6: memref<1x2x4x9xf32, #tpu.memory_space<vmem>>) attributes {dimension_semantics = [#tpu.dimension_semantics<parallel>], iteration_bounds = array<i64: 2>, scalar_prefetch = 0 : i64, scratch_operands = 0 : i64, tpu.core_type = #tpu.core_type<tc>, window_params = [{transform_indices = @transform_0, window_bounds = array<i64: 1, 4, 9>}, {transform_indices = @transform_1, window_bounds = array<i64: 1, 4, 9>}, {pipeline_mode = #tpu.pipeline_mode<synchronous>, transform_indices = @transform_2, window_bounds = array<i64: 2, 9>}, {pipeline_mode = #tpu.pipeline_mode<synchronous>, transform_indices = @transform_3, window_bounds = array<i64: 2, 9>}, {transform_indices = @transform_4, window_bounds = array<i64: 1, 2, 4, 9>}, {transform_indices = @transform_5, window_bounds = array<i64: 1, 2, 4, 9>}]} {
    %c0 = arith.constant 0 : index
    %c0_0 = arith.constant 0 : index
    %c0_1 = arith.constant 0 : index
    %0 = vector.load %arg1[%c0, %c0_0, %c0_1] : memref<1x4x9xf32, #tpu.memory_space<vmem>>, vector<1x4x9xf32>
    %1 = vector.shape_cast %0 : vector<1x4x9xf32> to vector<4x9xf32>
    %c0_2 = arith.constant 0 : index
    %c0_3 = arith.constant 0 : index
    %c0_4 = arith.constant 0 : index
    %2 = vector.load %arg2[%c0_2, %c0_3, %c0_4] : memref<1x4x9xf32, #tpu.memory_space<vmem>>, vector<1x4x9xf32>
    %3 = vector.shape_cast %2 : vector<1x4x9xf32> to vector<4x9xf32>
    %c0_5 = arith.constant 0 : index
    %c0_6 = arith.constant 0 : index
    %4 = vector.load %arg3[%c0_5, %c0_6] : memref<2x9xf32, #tpu.memory_space<vmem>>, vector<2x9xf32>
    %c0_7 = arith.constant 0 : index
    %c0_8 = arith.constant 0 : index
    %5 = vector.load %arg4[%c0_7, %c0_8] : memref<2x9xf32, #tpu.memory_space<vmem>>, vector<2x9xf32>
    %6 = vector.shape_cast %1 : vector<4x9xf32> to vector<1x4x9xf32>
    %7 = vector.shape_cast %4 : vector<2x9xf32> to vector<2x1x9xf32>
    %8 = vector.broadcast %6 : vector<1x4x9xf32> to vector<2x4x9xf32>
    %9 = vector.broadcast %7 : vector<2x1x9xf32> to vector<2x4x9xf32>
    %10 = arith.mulf %8, %9 : vector<2x4x9xf32>
    %c0_9 = arith.constant 0 : index
    %c0_10 = arith.constant 0 : index
    %c0_11 = arith.constant 0 : index
    %c0_12 = arith.constant 0 : index
    %11 = vector.load %arg5[%c0_9, %c0_10, %c0_11, %c0_12] : memref<1x2x4x9xf32, #tpu.memory_space<vmem>>, vector<1x2x4x9xf32>
    %12 = vector.shape_cast %11 : vector<1x2x4x9xf32> to vector<2x4x9xf32>
    %13 = vector.shape_cast %10 : vector<2x4x9xf32> to vector<1x2x4x9xf32>
    tpu.vector_store %arg5[%c0_9, %c0_10, %c0_11, %c0_12], %13 {strides = array<i32>} : memref<1x2x4x9xf32, #tpu.memory_space<vmem>>, vector<1x2x4x9xf32>,
    %14 = vector.shape_cast %3 : vector<4x9xf32> to vector<1x4x9xf32>
    %15 = vector.shape_cast %5 : vector<2x9xf32> to vector<2x1x9xf32>
    %16 = vector.broadcast %14 : vector<1x4x9xf32> to vector<2x4x9xf32>
    %17 = vector.broadcast %15 : vector<2x1x9xf32> to vector<2x4x9xf32>
    %18 = arith.mulf %16, %17 : vector<2x4x9xf32>
    %c0_13 = arith.constant 0 : index
    %c0_14 = arith.constant 0 : index
    %c0_15 = arith.constant 0 : index
    %c0_16 = arith.constant 0 : index
    %19 = vector.load %arg6[%c0_13, %c0_14, %c0_15, %c0_16] : memref<1x2x4x9xf32, #tpu.memory_space<vmem>>, vector<1x2x4x9xf32>
    %20 = vector.shape_cast %19 : vector<1x2x4x9xf32> to vector<2x4x9xf32>
    %21 = vector.shape_cast %18 : vector<2x4x9xf32> to vector<1x2x4x9xf32>
    tpu.vector_store %arg6[%c0_13, %c0_14, %c0_15, %c0_16], %21 {strides = array<i32>} : memref<1x2x4x9xf32, #tpu.memory_space<vmem>>, vector<1x2x4x9xf32>,
    return
  }
  func.func @transform_0(%arg0: i32) -> (i32, i32, i32) {
    %c0_i32 = arith.constant 0 : i32
    %c0_i32_0 = arith.constant 0 : i32
    %c0_i32_1 = arith.constant 0 : i32
    return %arg0, %c0_i32, %c0_i32_0 : i32, i32, i32
  }
  func.func @transform_1(%arg0: i32) -> (i32, i32, i32) {
    %c0_i32 = arith.constant 0 : i32
    %c0_i32_0 = arith.constant 0 : i32
    %c0_i32_1 = arith.constant 0 : i32
    return %arg0, %c0_i32, %c0_i32_0 : i32, i32, i32
  }
  func.func @transform_2(%arg0: i32) -> (i32, i32) {
    %c0_i32 = arith.constant 0 : i32
    %c0_i32_0 = arith.constant 0 : i32
    %c0_i32_1 = arith.constant 0 : i32
    return %c0_i32, %c0_i32_0 : i32, i32
  }
  func.func @transform_3(%arg0: i32) -> (i32, i32) {
    %c0_i32 = arith.constant 0 : i32
    %c0_i32_0 = arith.constant 0 : i32
    %c0_i32_1 = arith.constant 0 : i32
    return %c0_i32, %c0_i32_0 : i32, i32
  }
  func.func @transform_4(%arg0: i32) -> (i32, i32, i32, i32) {
    %c0_i32 = arith.constant 0 : i32
    %c0_i32_0 = arith.constant 0 : i32
    %c0_i32_1 = arith.constant 0 : i32
    %c0_i32_2 = arith.constant 0 : i32
    return %arg0, %c0_i32, %c0_i32_0, %c0_i32_1 : i32, i32, i32, i32
  }
  func.func @transform_5(%arg0: i32) -> (i32, i32, i32, i32) {
    %c0_i32 = arith.constant 0 : i32
    %c0_i32_0 = arith.constant 0 : i32
    %c0_i32_1 = arith.constant 0 : i32
    %c0_i32_2 = arith.constant 0 : i32
    return %arg0, %c0_i32, %c0_i32_0, %c0_i32_1 : i32, i32, i32, i32
  }
}

module attributes {stable_mosaic.version = 11 : i64} {
  func.func @kernel(%arg0: i32, %arg1: memref<1x8x16xf32, #tpu.memory_space<vmem>>, %arg2: memref<8x12xf32, #tpu.memory_space<vmem>>, %arg3: memref<8x12xf32, #tpu.memory_space<vmem>>, %arg4: memref<1x1x12xf32, #tpu.memory_space<vmem>>) attributes {dimension_semantics = [#tpu.dimension_semantics<parallel>], iteration_bounds = array<i64: 2>, scalar_prefetch = 0 : i64, scratch_operands = 0 : i64, tpu.core_type = #tpu.core_type<tc>, window_params = [{transform_indices = @transform_0, window_bounds = array<i64: 1, 8, 16>}, {pipeline_mode = #tpu.pipeline_mode<synchronous>, transform_indices = @transform_1, window_bounds = array<i64: 8, 12>}, {pipeline_mode = #tpu.pipeline_mode<synchronous>, transform_indices = @transform_2, window_bounds = array<i64: 8, 12>}, {transform_indices = @transform_3, window_bounds = array<i64: 1, 1, 12>}]} {
    %c0 = arith.constant 0 : index
    %c0_0 = arith.constant 0 : index
    %c0_1 = arith.constant 0 : index
    %0 = vector.load %arg1[%c0, %c0_0, %c0_1] : memref<1x8x16xf32, #tpu.memory_space<vmem>>, vector<1x8x16xf32>
    %1 = vector.shape_cast %0 : vector<1x8x16xf32> to vector<8x16xf32>
    %cst = arith.constant dense<0.000000e+00> : vector<8xf32>
    %2 = vector.multi_reduction <add>, %1, %cst [1] : vector<8x16xf32> to vector<8xf32>
    %3 = vector.shape_cast %2 : vector<8xf32> to vector<8x1xf32>
    %cst_2 = arith.constant 1.600000e+01 : f32
    %4 = vector.broadcast %cst_2 : f32 to vector<8x1xf32>
    %5 = arith.divf %3, %4 : vector<8x1xf32>
    %6 = vector.broadcast %5 : vector<8x1xf32> to vector<8x16xf32>
    %7 = arith.subf %1, %6 : vector<8x16xf32>
    %8 = arith.mulf %7, %7 : vector<8x16xf32>
    %cst_3 = arith.constant dense<0.000000e+00> : vector<8xf32>
    %9 = vector.multi_reduction <add>, %8, %cst_3 [1] : vector<8x16xf32> to vector<8xf32>
    %10 = vector.shape_cast %9 : vector<8xf32> to vector<8x1xf32>
    %cst_4 = arith.constant 0.0666666701 : f32
    %11 = vector.broadcast %cst_4 : f32 to vector<8x1xf32>
    %12 = arith.mulf %10, %11 : vector<8x1xf32>
    %cst_5 = arith.constant 9.99999997E-7 : f32
    %13 = vector.broadcast %cst_5 : f32 to vector<8x1xf32>
    %14 = arith.addf %12, %13 : vector<8x1xf32>
    %15 = math.rsqrt %14 : vector<8x1xf32>
    %16 = arith.truncf %7 : vector<8x16xf32> to vector<8x16xbf16>
    %cst_6 = arith.constant dense<0.000000e+00> : vector<8x8xf32>
    %17 = tpu.matmul %16, %16, %cst_6 {dimension_numbers = #tpu.dot_dimension_numbers<[1], [1], [0], [0], [0, 0, 1, 0], [], []>} : vector<8x16xbf16>, vector<8x16xbf16>, vector<8x8xf32> -> vector<8x8xf32>
    %c0_7 = arith.constant 0 : index
    %c0_8 = arith.constant 0 : index
    %18 = vector.load %arg2[%c0_7, %c0_8] : memref<8x12xf32, #tpu.memory_space<vmem>>, vector<8x12xf32>
    %c0_9 = arith.constant 0 : index
    %c0_10 = arith.constant 0 : index
    %19 = vector.load %arg3[%c0_9, %c0_10] : memref<8x12xf32, #tpu.memory_space<vmem>>, vector<8x12xf32>
    %cst_11 = arith.constant dense<0.000000e+00> : vector<8x12xf32>
    %20 = tpu.matmul %17, %19, %cst_11 {dimension_numbers = #tpu.dot_dimension_numbers<[1], [0], [0], [1], [0, 0, 1, 1], [], []>} : vector<8x8xf32>, vector<8x12xf32>, vector<8x12xf32> -> vector<8x12xf32>
    %21 = arith.mulf %18, %20 : vector<8x12xf32>
    %cst_12 = arith.constant dense<0.000000e+00> : vector<12xf32>
    %22 = vector.multi_reduction <add>, %21, %cst_12 [0] : vector<8x12xf32> to vector<12xf32>
    %23 = vector.shape_cast %22 : vector<12xf32> to vector<1x12xf32>
    %24 = vector.broadcast %15 : vector<8x1xf32> to vector<8x12xf32>
    %25 = arith.mulf %18, %24 : vector<8x12xf32>
    %cst_13 = arith.constant dense<0.000000e+00> : vector<12xf32>
    %26 = vector.multi_reduction <add>, %25, %cst_13 [0] : vector<8x12xf32> to vector<12xf32>
    %27 = vector.shape_cast %26 : vector<12xf32> to vector<1x12xf32>
    %28 = vector.broadcast %15 : vector<8x1xf32> to vector<8x12xf32>
    %29 = arith.mulf %19, %28 : vector<8x12xf32>
    %cst_14 = arith.constant dense<0.000000e+00> : vector<12xf32>
    %30 = vector.multi_reduction <add>, %29, %cst_14 [0] : vector<8x12xf32> to vector<12xf32>
    %31 = vector.shape_cast %30 : vector<12xf32> to vector<1x12xf32>
    %32 = math.absf %23 : vector<1x12xf32>
    %33 = arith.mulf %32, %27 : vector<1x12xf32>
    %34 = arith.mulf %33, %31 : vector<1x12xf32>
    %cst_15 = arith.constant 6.250000e-02 : f32
    %35 = vector.broadcast %cst_15 : f32 to vector<1x12xf32>
    %36 = arith.mulf %34, %35 : vector<1x12xf32>
    %c0_16 = arith.constant 0 : index
    %c0_17 = arith.constant 0 : index
    %c0_18 = arith.constant 0 : index
    %37 = vector.load %arg4[%c0_16, %c0_17, %c0_18] : memref<1x1x12xf32, #tpu.memory_space<vmem>>, vector<1x1x12xf32>
    %38 = vector.shape_cast %37 : vector<1x1x12xf32> to vector<1x12xf32>
    %39 = vector.shape_cast %36 : vector<1x12xf32> to vector<1x1x12xf32>
    tpu.vector_store %arg4[%c0_16, %c0_17, %c0_18], %39 {strides = array<i32>} : memref<1x1x12xf32, #tpu.memory_space<vmem>>, vector<1x1x12xf32>,
    return
  }
  func.func @transform_0(%arg0: i32) -> (i32, i32, i32) {
    %c0_i32 = arith.constant 0 : i32
    %c0_i32_0 = arith.constant 0 : i32
    %c0_i32_1 = arith.constant 0 : i32
    return %arg0, %c0_i32, %c0_i32_0 : i32, i32, i32
  }
  func.func @transform_1(%arg0: i32) -> (i32, i32) {
    %c0_i32 = arith.constant 0 : i32
    %c0_i32_0 = arith.constant 0 : i32
    %c0_i32_1 = arith.constant 0 : i32
    return %c0_i32, %c0_i32_0 : i32, i32
  }
  func.func @transform_2(%arg0: i32) -> (i32, i32) {
    %c0_i32 = arith.constant 0 : i32
    %c0_i32_0 = arith.constant 0 : i32
    %c0_i32_1 = arith.constant 0 : i32
    return %c0_i32, %c0_i32_0 : i32, i32
  }
  func.func @transform_3(%arg0: i32) -> (i32, i32, i32) {
    %c0_i32 = arith.constant 0 : i32
    %c0_i32_0 = arith.constant 0 : i32
    %c0_i32_1 = arith.constant 0 : i32
    return %arg0, %c0_i32, %c0_i32_0 : i32, i32, i32
  }
}

module attributes {stable_mosaic.version = 11 : i64} {
  func.func @_head_kernel(%arg0: i32, %arg1: memref<2x12xf32, #tpu.memory_space<vmem>>, %arg2: memref<3x12xf32, #tpu.memory_space<vmem>>, %arg3: memref<1x3xf32, #tpu.memory_space<vmem>>, %arg4: memref<2x3xf32, #tpu.memory_space<vmem>>) attributes {dimension_semantics = [#tpu.dimension_semantics<arbitrary>], iteration_bounds = array<i64: 1>, scalar_prefetch = 0 : i64, scratch_operands = 0 : i64, tpu.core_type = #tpu.core_type<tc>, window_params = [{pipeline_mode = #tpu.pipeline_mode<synchronous>, transform_indices = @transform_0, window_bounds = array<i64: 2, 12>}, {pipeline_mode = #tpu.pipeline_mode<synchronous>, transform_indices = @transform_1, window_bounds = array<i64: 3, 12>}, {pipeline_mode = #tpu.pipeline_mode<synchronous>, transform_indices = @transform_2, window_bounds = array<i64: 1, 3>}, {pipeline_mode = #tpu.pipeline_mode<synchronous>, transform_indices = @transform_3, window_bounds = array<i64: 2, 3>}]} {
    %c0 = arith.constant 0 : index
    %c0_0 = arith.constant 0 : index
    %0 = vector.load %arg1[%c0, %c0_0] : memref<2x12xf32, #tpu.memory_space<vmem>>, vector<2x12xf32>
    %cst = arith.constant dense<0.000000e+00> : vector<12xf32>
    %1 = vector.multi_reduction <add>, %0, %cst [0] : vector<2x12xf32> to vector<12xf32>
    %2 = vector.shape_cast %1 : vector<12xf32> to vector<1x12xf32>
    %cst_1 = arith.constant 2.000000e+00 : f32
    %3 = vector.broadcast %cst_1 : f32 to vector<1x12xf32>
    %4 = arith.divf %2, %3 : vector<1x12xf32>
    %5 = vector.broadcast %4 : vector<1x12xf32> to vector<2x12xf32>
    %6 = arith.subf %0, %5 : vector<2x12xf32>
    %7 = vector.broadcast %4 : vector<1x12xf32> to vector<2x12xf32>
    %8 = arith.subf %0, %7 : vector<2x12xf32>
    %9 = arith.mulf %6, %8 : vector<2x12xf32>
    %cst_2 = arith.constant dense<0.000000e+00> : vector<12xf32>
    %10 = vector.multi_reduction <add>, %9, %cst_2 [0] : vector<2x12xf32> to vector<12xf32>
    %11 = vector.shape_cast %10 : vector<12xf32> to vector<1x12xf32>
    %cst_3 = arith.constant 2.000000e+00 : f32
    %12 = vector.broadcast %cst_3 : f32 to vector<1x12xf32>
    %13 = arith.divf %11, %12 : vector<1x12xf32>
    %14 = vector.broadcast %4 : vector<1x12xf32> to vector<2x12xf32>
    %15 = arith.subf %0, %14 : vector<2x12xf32>
    %cst_4 = arith.constant 9.99999974E-6 : f32
    %16 = vector.broadcast %cst_4 : f32 to vector<1x12xf32>
    %17 = arith.addf %13, %16 : vector<1x12xf32>
    %18 = math.rsqrt %17 : vector<1x12xf32>
    %19 = vector.broadcast %18 : vector<1x12xf32> to vector<2x12xf32>
    %20 = arith.mulf %15, %19 : vector<2x12xf32>
    %c0_5 = arith.constant 0 : index
    %c0_6 = arith.constant 0 : index
    %21 = vector.load %arg2[%c0_5, %c0_6] : memref<3x12xf32, #tpu.memory_space<vmem>>, vector<3x12xf32>
    %cst_7 = arith.constant dense<0.000000e+00> : vector<2x3xf32>
    %22 = tpu.matmul %20, %21, %cst_7 {dimension_numbers = #tpu.dot_dimension_numbers<[1], [1], [0], [0], [0, 0, 1, 0], [], []>} : vector<2x12xf32>, vector<3x12xf32>, vector<2x3xf32> -> vector<2x3xf32>
    %c0_8 = arith.constant 0 : index
    %c0_9 = arith.constant 0 : index
    %23 = vector.load %arg3[%c0_8, %c0_9] : memref<1x3xf32, #tpu.memory_space<vmem>>, vector<1x3xf32>
    %24 = vector.broadcast %23 : vector<1x3xf32> to vector<2x3xf32>
    %25 = arith.addf %22, %24 : vector<2x3xf32>
    %26 = arith.negf %25 : vector<2x3xf32>
    %27 = math.exp %26 : vector<2x3xf32>
    %cst_10 = arith.constant 1.000000e+00 : f32
    %28 = vector.broadcast %cst_10 : f32 to vector<2x3xf32>
    %29 = arith.addf %28, %27 : vector<2x3xf32>
    %30 = arith.divf %28, %29 : vector<2x3xf32>
    %c0_11 = arith.constant 0 : index
    %c0_12 = arith.constant 0 : index
    %31 = vector.load %arg4[%c0_11, %c0_12] : memref<2x3xf32, #tpu.memory_space<vmem>>, vector<2x3xf32>
    tpu.vector_store %arg4[%c0_11, %c0_12], %30 {strides = array<i32>} : memref<2x3xf32, #tpu.memory_space<vmem>>, vector<2x3xf32>,
    return
  }
  func.func @transform_0(%arg0: i32) -> (i32, i32) {
    %c0_i32 = arith.constant 0 : i32
    %c0_i32_0 = arith.constant 0 : i32
    %c0_i32_1 = arith.constant 0 : i32
    return %c0_i32, %c0_i32_0 : i32, i32
  }
  func.func @transform_1(%arg0: i32) -> (i32, i32) {
    %c0_i32 = arith.constant 0 : i32
    %c0_i32_0 = arith.constant 0 : i32
    %c0_i32_1 = arith.constant 0 : i32
    return %c0_i32, %c0_i32_0 : i32, i32
  }
  func.func @transform_2(%arg0: i32) -> (i32, i32) {
    %c0_i32 = arith.constant 0 : i32
    %c0_i32_0 = arith.constant 0 : i32
    %c0_i32_1 = arith.constant 0 : i32
    return %c0_i32, %c0_i32_0 : i32, i32
  }
  func.func @transform_3(%arg0: i32) -> (i32, i32) {
    %c0_i32 = arith.constant 0 : i32
    %c0_i32_0 = arith.constant 0 : i32
    %c0_i32_1 = arith.constant 0 : i32
    return %c0_i32, %c0_i32_0 : i32, i32
  }
}

</mosaic_0001>

<llo_original>
// kernel: reverse.1
$region0: #{reverse.1}
  %s0 = inlined_call_operand.vmem [shape: f32[2,2,4,7], index: 0, kind: input, shape index: {}]
  %s1 = inlined_call_operand.vmem [shape: f32[2,2,4,7], index: 1, kind: output, shape index: {}]
  %v2 = vlaneseq
  %v3 = vsub.s32 6, %v2
  %4 = vset.pattern.permute.xlu0 %v3
  $region1: #{reverse.1} parent=0
    #allocation0 [shape = 'u8[16384]{0}', space=vmem, size = 0x4000, scoped, tag = 'operand span for operand 0']
    #allocation1 [shape = 'u8[8192]{0}', space=vmem, size = 0x2000, scoped, tag = 'packed  for operand 0']
    #allocation2 [shape = 'u8[16384]{0}', space=vmem, size = 0x4000, scoped, tag = 'operand span for operand 1']
    #allocation3 [shape = 'u8[8192]{0}', space=vmem, size = 0x2000, scoped, tag = 'packed  for operand 1']
    // Predicated region
    $region2: #{reverse.1} parent=1 // pred_check
      _
    $region3: #{reverse.1} parent=1 // pred_check_branch
      %6 = sbr.rel (0) target = $region5
    $region4: #{reverse.1} parent=1 // pred_region
      // Predicated region
      $region6: #{reverse.1} parent=4 // pred_check
        _
      $region7: #{reverse.1} parent=4 // pred_check_branch
        %8 = sbr.rel target = $region9
      $region8: #{reverse.1} parent=4 // pred_region
        // Predicated region
        $region21: #{reverse.1} parent=8 // pred_check
          _
        $region22: #{reverse.1} parent=8 // pred_check_branch
          %29 = sbr.rel (0) target = $region24
        $region23: #{reverse.1} parent=8 // pred_region
          loop: start=0, step=1, limit=1
          $region25: #{reverse.1} parent=23 // loop_pre_header
            _
          $region26: #{reverse.1} parent=23 // loop_header
            %s31 = sphi 0, %s35
            %p32 = scmp.ge.s32.totalorder %s31, 1
            %s36 = sphi %s0, %s0
            %s37 = sphi [#allocation1], [#allocation1]
          $region27: #{reverse.1} parent=23 // loop_header_branch
            %34 = sbr.rel (%p32) target = $region31
          $region28: #{reverse.1} parent=23 // loop_body
            _
          $region29: #{reverse.1} parent=23 // loop_footer
            %s35 = sadd.s32 1, %s31
          $region30: #{reverse.1} parent=23 // loop_footer_branch
            %30 = sbr.rel target = $region26
          $region31: #{reverse.1} parent=23 // loop_exit
            _
          loop: start=0, step=1, limit=1
          $region32: #{reverse.1} parent=23 // loop_pre_header
            _
          $region33: #{reverse.1} parent=23 // loop_header
            %s40 = sphi 0, %s44
            %p41 = scmp.ge.s32.totalorder %s40, 1
            %s45 = sphi %s0, %s0
            %s46 = sphi [#allocation1], [#allocation1]
          $region34: #{reverse.1} parent=23 // loop_header_branch
            %43 = sbr.rel (%p41) target = $region38
          $region35: #{reverse.1} parent=23 // loop_body
            %v47 = vld [vmem:[%s45] sm:$0xf]
            %48 = vst [vmem:[%s46] sm:$0xf] %v47
            %v49 = vld [vmem:[%s45 + $0x4] sm:$0xf]
            %50 = vst [vmem:[%s46 + $0x4] sm:$0xf] %v49
            %v51 = vld [vmem:[%s45 + $0x8] sm:$0xf]
            %52 = vst [vmem:[%s46 + $0x8] sm:$0xf] %v51
            %v53 = vld [vmem:[%s45 + $0xc] sm:$0xf]
            %54 = vst [vmem:[%s46 + $0xc] sm:$0xf] %v53
          $region36: #{reverse.1} parent=23 // loop_footer
            %s44 = sadd.s32 1, %s40
          $region37: #{reverse.1} parent=23 // loop_footer_branch
            %39 = sbr.rel target = $region33
          $region38: #{reverse.1} parent=23 // loop_exit
            _
        $region24: #{reverse.1} parent=8 // pred_fallthru
          _
      $region9: #{reverse.1} parent=4 // pred_fallthru
        _
      // Predicated region
      $region10: #{reverse.1} parent=4 // pred_check
        _
      $region11: #{reverse.1} parent=4 // pred_check_branch
        %10 = sbr.rel (0) target = $region13
      $region12: #{reverse.1} parent=4 // pred_region
        loop: start=0, step=1, limit=1
        $region14: #{reverse.1} parent=12 // loop_pre_header
          _
        $region15: #{reverse.1} parent=12 // loop_header
          %s13 = sphi 0, %s17
          %p14 = scmp.ge.s32.totalorder %s13, 1
          %s18 = sphi %s0, %s0
          %s19 = sphi [#allocation1], [#allocation1]
        $region16: #{reverse.1} parent=12 // loop_header_branch
          %16 = sbr.rel (%p14) target = $region20
        $region17: #{reverse.1} parent=12 // loop_body
          %v20 = vld [vmem:[%s18] sm:$0xf]
          %21 = vst [vmem:[%s19] sm:$0xf] %v20
          %v22 = vld [vmem:[%s18 + $0x4] sm:$0xf]
          %23 = vst [vmem:[%s19 + $0x4] sm:$0xf] %v22
          %v24 = vld [vmem:[%s18 + $0x8] sm:$0xf]
          %25 = vst [vmem:[%s19 + $0x8] sm:$0xf] %v24
          %v26 = vld [vmem:[%s18 + $0xc] sm:$0xf]
          %27 = vst [vmem:[%s19 + $0xc] sm:$0xf] %v26
        $region18: #{reverse.1} parent=12 // loop_footer
          %s17 = sadd.s32 1, %s13
        $region19: #{reverse.1} parent=12 // loop_footer_branch
          %12 = sbr.rel target = $region15
        $region20: #{reverse.1} parent=12 // loop_exit
          _
      $region13: #{reverse.1} parent=4 // pred_fallthru
        _
    $region5: #{reverse.1} parent=1 // pred_fallthru
      _
    %55 = vnop
    %s57 = sshllo.u32 0, 4
    %s58 = smul.addr 4, 3
    %s59 = scalar_lea.vmem [#allocation1], %s58
    %v60 = vld [vmem:[%s59] sm:%s57]
    %s61 = scalar_lea.vmem [#allocation0], 24
    %62 = vst [vmem:[%s61] sm:%s57] %v60
    %s63 = smul.addr 4, 2
    %s64 = scalar_lea.vmem [#allocation1], %s63
    %v65 = vld [vmem:[%s64] sm:%s57]
    %s66 = scalar_lea.vmem [#allocation0], 16
    %67 = vst [vmem:[%s66] sm:%s57] %v65
    %s68 = scalar_lea.vmem [#allocation1], 4
    %v69 = vld [vmem:[%s68] sm:%s57]
    %s70 = scalar_lea.vmem [#allocation0], 8
    %71 = vst [vmem:[%s70] sm:%s57] %v69
    %v72 = vld [vmem:[#allocation1] sm:%s57]
    %73 = vst [vmem:[#allocation0] sm:%s57] %v72
    %v74 = vld [vmem:[#allocation0] sm:$0xff]
    %75 = vperm.xlu0 %4, %v74
    %v76 = vpop.permute.xlu0 %75
    %77 = vst [vmem:[#allocation2] sm:$0xff] %v76
    %s78 = scalar_lea.vmem [#allocation2], 8
    %s79 = scalar_lea.vmem [#allocation0], 8
    %v80 = vld [vmem:[%s79] sm:$0xff]
    %81 = vperm.xlu0 %4, %v80
    %v82 = vpop.permute.xlu0 %81
    %83 = vst [vmem:[%s78] sm:$0xff] %v82
    %s84 = scalar_lea.vmem [#allocation2], 16
    %s85 = scalar_lea.vmem [#allocation0], 16
    %v86 = vld [vmem:[%s85] sm:$0xff]
    %87 = vperm.xlu0 %4, %v86
    %v88 = vpop.permute.xlu0 %87
    %89 = vst [vmem:[%s84] sm:$0xff] %v88
    %s90 = scalar_lea.vmem [#allocation2], 24
    %s91 = scalar_lea.vmem [#allocation0], 24
    %v92 = vld [vmem:[%s91] sm:$0xff]
    %93 = vperm.xlu0 %4, %v92
    %v94 = vpop.permute.xlu0 %93
    %95 = vst [vmem:[%s90] sm:$0xff] %v94
    %s97 = sshllo.u32 0, 4
    %v99 = vld [vmem:[#allocation2] sm:%s97]
    %s100 = sshllo.u32 0, 4
    %101 = vst [vmem:[#allocation3] sm:%s100] %v99
    %s102 = scalar_lea.vmem [#allocation2], 8
    %v103 = vld [vmem:[%s102] sm:%s97]
    %s104 = sshllo.u32 0, 4
    %s105 = scalar_lea.vmem [#allocation3], 4
    %106 = vst [vmem:[%s105] sm:%s104] %v103
    %s107 = scalar_lea.vmem [#allocation2], 16
    %v108 = vld [vmem:[%s107] sm:%s97]
    %s109 = sshllo.u32 0, 4
    %s110 = smul.addr 4, 2
    %s111 = scalar_lea.vmem [#allocation3], %s110
    %112 = vst [vmem:[%s111] sm:%s109] %v108
    %s113 = scalar_lea.vmem [#allocation2], 24
    %v114 = vld [vmem:[%s113] sm:%s97]
    %s115 = sshllo.u32 0, 4
    %s116 = smul.addr 4, 3
    %s117 = scalar_lea.vmem [#allocation3], %s116
    %118 = vst [vmem:[%s117] sm:%s115] %v114
    // Predicated region
    $region39: #{reverse.1} parent=1 // pred_check
      _
    $region40: #{reverse.1} parent=1 // pred_check_branch
      %120 = sbr.rel (0) target = $region42
    $region41: #{reverse.1} parent=1 // pred_region
      // Predicated region
      $region43: #{reverse.1} parent=41 // pred_check
        _
      $region44: #{reverse.1} parent=41 // pred_check_branch
        %122 = sbr.rel target = $region46
      $region45: #{reverse.1} parent=41 // pred_region
        // Predicated region
        $region58: #{reverse.1} parent=45 // pred_check
          _
        $region59: #{reverse.1} parent=45 // pred_check_branch
          %143 = sbr.rel (0) target = $region61
        $region60: #{reverse.1} parent=45 // pred_region
          loop: start=0, step=1, limit=1
          $region62: #{reverse.1} parent=60 // loop_pre_header
            _
          $region63: #{reverse.1} parent=60 // loop_header
            %s145 = sphi 0, %s149
            %p146 = scmp.ge.s32.totalorder %s145, 1
            %s150 = sphi [#allocation3], [#allocation3]
            %s151 = sphi %s1, %s1
          $region64: #{reverse.1} parent=60 // loop_header_branch
            %148 = sbr.rel (%p146) target = $region68
          $region65: #{reverse.1} parent=60 // loop_body
            _
          $region66: #{reverse.1} parent=60 // loop_footer
            %s149 = sadd.s32 1, %s145
          $region67: #{reverse.1} parent=60 // loop_footer_branch
            %144 = sbr.rel target = $region63
          $region68: #{reverse.1} parent=60 // loop_exit
            _
          loop: start=0, step=1, limit=1
          $region69: #{reverse.1} parent=60 // loop_pre_header
            _
          $region70: #{reverse.1} parent=60 // loop_header
            %s154 = sphi 0, %s158
            %p155 = scmp.ge.s32.totalorder %s154, 1
            %s159 = sphi [#allocation3], [#allocation3]
            %s160 = sphi %s1, %s1
          $region71: #{reverse.1} parent=60 // loop_header_branch
            %157 = sbr.rel (%p155) target = $region75
          $region72: #{reverse.1} parent=60 // loop_body
            %v161 = vld [vmem:[%s159] sm:$0xf]
            %162 = vst [vmem:[%s160] sm:$0xf] %v161
            %v163 = vld [vmem:[%s159 + $0x4] sm:$0xf]
            %164 = vst [vmem:[%s160 + $0x4] sm:$0xf] %v163
            %v165 = vld [vmem:[%s159 + $0x8] sm:$0xf]
            %166 = vst [vmem:[%s160 + $0x8] sm:$0xf] %v165
            %v167 = vld [vmem:[%s159 + $0xc] sm:$0xf]
            %168 = vst [vmem:[%s160 + $0xc] sm:$0xf] %v167
          $region73: #{reverse.1} parent=60 // loop_footer
            %s158 = sadd.s32 1, %s154
          $region74: #{reverse.1} parent=60 // loop_footer_branch
            %153 = sbr.rel target = $region70
          $region75: #{reverse.1} parent=60 // loop_exit
            _
        $region61: #{reverse.1} parent=45 // pred_fallthru
          _
      $region46: #{reverse.1} parent=41 // pred_fallthru
        _
      // Predicated region
      $region47: #{reverse.1} parent=41 // pred_check
        _
      $region48: #{reverse.1} parent=41 // pred_check_branch
        %124 = sbr.rel (0) target = $region50
      $region49: #{reverse.1} parent=41 // pred_region
        loop: start=0, step=1, limit=1
        $region51: #{reverse.1} parent=49 // loop_pre_header
          _
        $region52: #{reverse.1} parent=49 // loop_header
          %s127 = sphi 0, %s131
          %p128 = scmp.ge.s32.totalorder %s127, 1
          %s132 = sphi [#allocation3], [#allocation3]
          %s133 = sphi %s1, %s1
        $region53: #{reverse.1} parent=49 // loop_header_branch
          %130 = sbr.rel (%p128) target = $region57
        $region54: #{reverse.1} parent=49 // loop_body
          %v134 = vld [vmem:[%s132] sm:$0xf]
          %135 = vst [vmem:[%s133] sm:$0xf] %v134
          %v136 = vld [vmem:[%s132 + $0x4] sm:$0xf]
          %137 = vst [vmem:[%s133 + $0x4] sm:$0xf] %v136
          %v138 = vld [vmem:[%s132 + $0x8] sm:$0xf]
          %139 = vst [vmem:[%s133 + $0x8] sm:$0xf] %v138
          %v140 = vld [vmem:[%s132 + $0xc] sm:$0xf]
          %141 = vst [vmem:[%s133 + $0xc] sm:$0xf] %v140
        $region55: #{reverse.1} parent=49 // loop_footer
          %s131 = sadd.s32 1, %s127
        $region56: #{reverse.1} parent=49 // loop_footer_branch
          %126 = sbr.rel target = $region52
        $region57: #{reverse.1} parent=49 // loop_exit
          _
      $region50: #{reverse.1} parent=41 // pred_fallthru
        _
    $region42: #{reverse.1} parent=1 // pred_fallthru
      _
    %169 = vnop

// kernel: corr_eegminer_forward.3
$region0: #{corr_eegminer_forward.3}
  #allocation0 [shape = 'u32[]', space=smem, size = 0x4, offset = 0x4, fixed_abs, tag = 'smem constant byte address 0x4 - core index']
  #allocation1 [shape = 'u32[144,128]{1,0:T(1,128)}', space=vmem, size = 0x12000, scoped, tag = 'internal scratch']
  %s0 = inlined_call_operand.vmem [shape: f32[2,4,9], index: 0, kind: input, shape index: {}]
  %s1 = inlined_call_operand.vmem [shape: f32[2,4,9], index: 1, kind: input, shape index: {}]
  %s2 = inlined_call_operand.vmem [shape: f32[2,9], index: 2, kind: input, shape index: {}]
  %s3 = inlined_call_operand.vmem [shape: f32[2,9], index: 3, kind: input, shape index: {}]
  %s4 = inlined_call_operand.vmem [shape: f32[2,2,4,9], index: 4, kind: output, shape index: {0}]
  %s5 = inlined_call_operand.vmem [shape: f32[2,2,4,9], index: 5, kind: output, shape index: {1}]
  %6 = xla_tuple %s4, %s5
  %s7 = sld [smem:[#allocation0]]
  $region57: #{corr_eegminer_forward.3} parent=0
    _
  %s9 = ssub.s32 1, %s7
  %s10 = scalar_select 0, %s9, %s7
  loop: start=0, step=1, limit=4
  $region2: #{corr_eegminer_forward.3} parent=0 // loop_pre_header
    _
  $region3: #{corr_eegminer_forward.3} parent=0 // loop_header
    %s12 = sphi 0, %s16
    %p13 = scmp.ge.s32.totalorder %s12, 4
    %s22 = sphi 0, %s24
    %s25 = sphi 0, %s22
    %s26 = sphi 0, %s25
    %s42 = sphi 0, %s26
    %s48 = sphi 0, %s50
    %s51 = sphi 0, %s48
    %s52 = sphi 0, %s51
    %s68 = sphi 0, %s52
    %s72 = sphi 0, %s72
    %s74 = sphi 0, %s72
    %s75 = sphi 0, %s74
    %s89 = sphi 0, %s75
    %s93 = sphi 0, %s93
    %s95 = sphi 0, %s93
    %s96 = sphi 0, %s95
    %s110 = sphi 0, %s96
    %s116 = sphi 0, %s118
    %s119 = sphi 0, %s116
    %s120 = sphi 0, %s119
    %s136 = sphi 0, %s120
    %s142 = sphi 0, %s144
    %s145 = sphi 0, %s142
    %s146 = sphi 0, %s145
    %s162 = sphi 0, %s146
  $region4: #{corr_eegminer_forward.3} parent=0 // loop_header_branch
    %15 = sbr.rel (%p13) target = $region8
  $region5: #{corr_eegminer_forward.3} parent=0 // loop_body
    %s17 = ssub.s32 %s12, 1
    %s18 = ssub.s32 %s12, 2
    %s19 = sadd.s32 %s12, 1
    %s20 = ssub.s32 %s12, %s19
    %p21 = scmp.eq.s32.totalorder %s20, 0
    %s23 = sadd.s32 %s22, 1
    %s24 = scalar_select %p21, %s22, %s23
    %p27 = pneg %p21
    %p28 = scmp.eq.s32.totalorder %s12, 1
    %p29 = por %p27, %p28
    %p30 = scmp.ne.s32.totalorder %s22, %s25
    %p31 = scmp.eq.s32.totalorder %s12, 0
    %p32 = por %p30, %p31
    %p33 = scmp.ne.s32.totalorder %s22, %s25
    %p34 = scmp.eq.s32.totalorder %s17, 1
    %p35 = por %p33, %p34
    %p36 = scmp.ne.s32.totalorder %s25, %s26
    %p37 = scmp.eq.s32.totalorder %s17, 0
    %p38 = por %p36, %p37
    %p39 = scmp.ne.s32.totalorder %s25, %s26
    %p40 = scmp.eq.s32.totalorder %s18, 1
    %p41 = por %p39, %p40
    %p43 = scmp.ne.s32.totalorder %s26, %s42
    %p44 = scmp.eq.s32.totalorder %s18, 0
    %p45 = por %p43, %p44
    %s46 = ssub.s32 %s12, %s19
    %p47 = scmp.eq.s32.totalorder %s46, 0
    %s49 = sadd.s32 %s48, 1
    %s50 = scalar_select %p47, %s48, %s49
    %p53 = pneg %p47
    %p54 = scmp.eq.s32.totalorder %s12, 1
    %p55 = por %p53, %p54
    %p56 = scmp.ne.s32.totalorder %s48, %s51
    %p57 = scmp.eq.s32.totalorder %s12, 0
    %p58 = por %p56, %p57
    %p59 = scmp.ne.s32.totalorder %s48, %s51
    %p60 = scmp.eq.s32.totalorder %s17, 1
    %p61 = por %p59, %p60
    %p62 = scmp.ne.s32.totalorder %s51, %s52
    %p63 = scmp.eq.s32.totalorder %s17, 0
    %p64 = por %p62, %p63
    %p65 = scmp.ne.s32.totalorder %s51, %s52
    %p66 = scmp.eq.s32.totalorder %s18, 1
    %p67 = por %p65, %p66
    %p69 = scmp.ne.s32.totalorder %s52, %s68
    %p70 = scmp.eq.s32.totalorder %s18, 0
    %p71 = por %p69, %p70
    %s73 = sadd.s32 %s72, 1
    %p76 = scmp.eq.s32.totalorder %s12, 1
    %p77 = scmp.ne.s32.totalorder %s72, %s74
    %p78 = scmp.eq.s32.totalorder %s12, 0
    %p79 = por %p77, %p78
    %p80 = scmp.ne.s32.totalorder %s72, %s74
    %p81 = scmp.eq.s32.totalorder %s17, 1
    %p82 = por %p80, %p81
    %p83 = scmp.ne.s32.totalorder %s74, %s75
    %p84 = scmp.eq.s32.totalorder %s17, 0
    %p85 = por %p83, %p84
    %p86 = scmp.ne.s32.totalorder %s74, %s75
    %p87 = scmp.eq.s32.totalorder %s18, 1
    %p88 = por %p86, %p87
    %p90 = scmp.ne.s32.totalorder %s75, %s89
    %p91 = scmp.eq.s32.totalorder %s18, 0
    %p92 = por %p90, %p91
    %s94 = sadd.s32 %s93, 1
    %p97 = scmp.eq.s32.totalorder %s12, 1
    %p98 = scmp.ne.s32.totalorder %s93, %s95
    %p99 = scmp.eq.s32.totalorder %s12, 0
    %p100 = por %p98, %p99
    %p101 = scmp.ne.s32.totalorder %s93, %s95
    %p102 = scmp.eq.s32.totalorder %s17, 1
    %p103 = por %p101, %p102
    %p104 = scmp.ne.s32.totalorder %s95, %s96
    %p105 = scmp.eq.s32.totalorder %s17, 0
    %p106 = por %p104, %p105
    %p107 = scmp.ne.s32.totalorder %s95, %s96
    %p108 = scmp.eq.s32.totalorder %s18, 1
    %p109 = por %p107, %p108
    %p111 = scmp.ne.s32.totalorder %s96, %s110
    %p112 = scmp.eq.s32.totalorder %s18, 0
    %p113 = por %p111, %p112
    %s114 = ssub.s32 %s12, %s19
    %p115 = scmp.eq.s32.totalorder %s114, 0
    %s117 = sadd.s32 %s116, 1
    %s118 = scalar_select %p115, %s116, %s117
    %p121 = pneg %p115
    %p122 = scmp.eq.s32.totalorder %s12, 1
    %p123 = por %p121, %p122
    %p124 = scmp.ne.s32.totalorder %s116, %s119
    %p125 = scmp.eq.s32.totalorder %s12, 0
    %p126 = por %p124, %p125
    %p127 = scmp.ne.s32.totalorder %s116, %s119
    %p128 = scmp.eq.s32.totalorder %s17, 1
    %p129 = por %p127, %p128
    %p130 = scmp.ne.s32.totalorder %s119, %s120
    %p131 = scmp.eq.s32.totalorder %s17, 0
    %p132 = por %p130, %p131
    %p133 = scmp.ne.s32.totalorder %s119, %s120
    %p134 = scmp.eq.s32.totalorder %s18, 1
    %p135 = por %p133, %p134
    %p137 = scmp.ne.s32.totalorder %s120, %s136
    %p138 = scmp.eq.s32.totalorder %s18, 0
    %p139 = por %p137, %p138
    %s140 = ssub.s32 %s12, %s19
    %p141 = scmp.eq.s32.totalorder %s140, 0
    %s143 = sadd.s32 %s142, 1
    %s144 = scalar_select %p141, %s142, %s143
    %p147 = pneg %p141
    %p148 = scmp.eq.s32.totalorder %s12, 1
    %p149 = por %p147, %p148
    %p150 = scmp.ne.s32.totalorder %s142, %s145
    %p151 = scmp.eq.s32.totalorder %s12, 0
    %p152 = por %p150, %p151
    %p153 = scmp.ne.s32.totalorder %s142, %s145
    %p154 = scmp.eq.s32.totalorder %s17, 1
    %p155 = por %p153, %p154
    %p156 = scmp.ne.s32.totalorder %s145, %s146
    %p157 = scmp.eq.s32.totalorder %s17, 0
    %p158 = por %p156, %p157
    %p159 = scmp.ne.s32.totalorder %s145, %s146
    %p160 = scmp.eq.s32.totalorder %s18, 1
    %p161 = por %p159, %p160
    %p163 = scmp.ne.s32.totalorder %s146, %s162
    %p164 = scmp.eq.s32.totalorder %s18, 0
    %p165 = por %p163, %p164
    %p166 = scmp.le.s32.totalorder 1, %s12
    %p167 = scmp.lt.s32.totalorder %s12, 3
    %p168 = pnand %p166, %p167
    %p169 = pneg %p168
    // Predicated region
    $region9: #{corr_eegminer_forward.3} parent=5 // pred_check
      _
    $region10: #{corr_eegminer_forward.3} parent=5 // pred_check_branch
      %171 = sbr.rel (%p168) target = $region12
    $region11: #{corr_eegminer_forward.3} parent=5 // pred_region
      %s172 = ssub.s32 %s12, 1
      // Predicated region
      $region13: #{corr_eegminer_forward.3} parent=11 // pred_check
        %p173 = pneg %p85
      $region14: #{corr_eegminer_forward.3} parent=11 // pred_check_branch
        %175 = sbr.rel (%p173) target = $region16
      $region15: #{corr_eegminer_forward.3} parent=11 // pred_region
        _
      $region16: #{corr_eegminer_forward.3} parent=11 // pred_fallthru
        _
      // Predicated region
      $region17: #{corr_eegminer_forward.3} parent=11 // pred_check
        %p176 = pneg %p106
      $region18: #{corr_eegminer_forward.3} parent=11 // pred_check_branch
        %178 = sbr.rel (%p176) target = $region20
      $region19: #{corr_eegminer_forward.3} parent=11 // pred_region
        _
      $region20: #{corr_eegminer_forward.3} parent=11 // pred_fallthru
        _
    $region12: #{corr_eegminer_forward.3} parent=5 // pred_fallthru
      _
    %p179 = scmp.lt.s32.totalorder %s12, 2
    // Predicated region
    $region21: #{corr_eegminer_forward.3} parent=5 // pred_check
      %p180 = pneg %p179
    $region22: #{corr_eegminer_forward.3} parent=5 // pred_check_branch
      %182 = sbr.rel (%p180) target = $region24
    $region23: #{corr_eegminer_forward.3} parent=5 // pred_region
      // Predicated region
      $region25: #{corr_eegminer_forward.3} parent=23 // pred_check
        %p183 = pneg %p32
      $region26: #{corr_eegminer_forward.3} parent=23 // pred_check_branch
        %185 = sbr.rel (%p183) target = $region28
      $region27: #{corr_eegminer_forward.3} parent=23 // pred_region
        %p186 = scmp.lt.s32.totalorder %s12, 1
        %s187 = scalar_select %p186, %s12, 1
        %s188 = smul.addr %s187, 4
        %s189 = scalar_lea.vmem %s0, %s188
      $region28: #{corr_eegminer_forward.3} parent=23 // pred_fallthru
        _
      // Predicated region
      $region29: #{corr_eegminer_forward.3} parent=23 // pred_check
        %p190 = pneg %p58
      $region30: #{corr_eegminer_forward.3} parent=23 // pred_check_branch
        %192 = sbr.rel (%p190) target = $region32
      $region31: #{corr_eegminer_forward.3} parent=23 // pred_region
        %p193 = scmp.lt.s32.totalorder %s12, 1
        %s194 = scalar_select %p193, %s12, 1
        %s195 = smul.addr %s194, 4
        %s196 = scalar_lea.vmem %s1, %s195
      $region32: #{corr_eegminer_forward.3} parent=23 // pred_fallthru
        _
    $region24: #{corr_eegminer_forward.3} parent=5 // pred_fallthru
      _
    %p197 = scmp.le.s32.totalorder 1, %s12
    %p198 = scmp.lt.s32.totalorder %s12, 3
    %p199 = pnand %p197, %p198
    %p200 = pneg %p199
    // Predicated region
    $region33: #{corr_eegminer_forward.3} parent=5 // pred_check
      _
    $region34: #{corr_eegminer_forward.3} parent=5 // pred_check_branch
      %202 = sbr.rel (%p199) target = $region36
    $region35: #{corr_eegminer_forward.3} parent=5 // pred_region
      %s203 = ssub.s32 %s12, 1
      %p204 = scmp.lt.s32.totalorder %s17, 1
      %s205 = scalar_select %p204, %s17, 1
      %s206 = smul.addr %s205, 4
      %s207 = scalar_lea.vmem %s0, %s206
      %p208 = pneg %p38
      %p209 = pneg %p35
      %p210 = scmp.lt.s32.totalorder %s17, 1
      %s211 = scalar_select %p210, %s17, 1
      %s212 = smul.addr %s211, 4
      %s213 = scalar_lea.vmem %s1, %s212
      %p214 = pneg %p64
      %p215 = pneg %p61
      %p216 = pneg %p85
      %p217 = pneg %p82
      %p218 = pneg %p106
      %p219 = pneg %p103
      %p220 = pneg %p132
      %p221 = pneg %p129
      %p222 = scmp.lt.s32.totalorder %s17, 1
      %s223 = scalar_select %p222, %s17, 1
      %s224 = smul.addr %s223, 2
      %s225 = smul.addr %s224, 4
      %s226 = scalar_lea.vmem %s4, %s225
      %p227 = pneg %p158
      %p228 = pneg %p155
      %p229 = scmp.lt.s32.totalorder %s17, 1
      %s230 = scalar_select %p229, %s17, 1
      %s231 = smul.addr %s230, 2
      %s232 = smul.addr %s231, 4
      %s233 = scalar_lea.vmem %s5, %s232
      %p234 = scmp.lt.s32.totalorder %s17, 1
      %s235 = scalar_select %p234, %s17, 1
      %s236 = smul.addr %s235, 4
      %s237 = scalar_lea.vmem %s0, %s236
      %p238 = scmp.lt.s32.totalorder %s17, 1
      %s239 = scalar_select %p238, %s17, 1
      %s240 = smul.addr %s239, 4
      %s241 = scalar_lea.vmem %s1, %s240
      %p242 = scmp.lt.s32.totalorder %s17, 1
      %s243 = scalar_select %p242, %s17, 1
      %s244 = smul.addr %s243, 2
      %s245 = smul.addr %s244, 4
      %s246 = scalar_lea.vmem %s4, %s245
      %p247 = scmp.lt.s32.totalorder %s17, 1
      %s248 = scalar_select %p247, %s17, 1
      %s249 = smul.addr %s248, 2
      %s250 = smul.addr %s249, 4
      %s251 = scalar_lea.vmem %s5, %s250
      %v252 = vld [vmem:[%s237] sm:$0xf]
      %v253 = vld [vmem:[%s241] sm:$0xf]
      %v254 = vld [vmem:[%s2] sm:$0x3]
      %v255 = vld [vmem:[%s3] sm:$0x3]
      %v258 = vunpack.c.l.s4 1966171168
      %v259 = vunpack.c.0.s8 %v258
      %v260 = vlaneseq
      %v261 = vshrl.u32 %v260, 7
      %v262 = vsub.s32 %v259, %v261
      %v263 = vrot.slane %v254, %v262
      %v264 = vcombine.high %v263, %v263
      %v266 = vunpack.c.l.s4 1966171168
      %v267 = vunpack.c.0.s8 %v266
      %v268 = vlaneseq
      %v269 = vshrl.u32 %v268, 7
      %v270 = vsub.s32 %v267, %v269
      %v271 = vrot.slane %v263, %v270
      %v273 = vunpack.c.l.s4 1966171168
      %v274 = vunpack.c.0.s8 %v273
      %v275 = vlaneseq
      %v276 = vshrl.u32 %v275, 7
      %v277 = vsub.s32 %v274, %v276
      %v278 = vrot.slane %v264, %v277
      %v279 = vlaneseq
      %v280 = vshrl.u32 %v279, 7
      %v281 = vsub.s32 0, %v280
      %v282 = vrot.slane %v271, %v281
      %v283 = vlaneseq
      %v284 = vshrl.u32 %v283, 7
      %v285 = vsub.s32 0, %v284
      %v286 = vrot.slane %v278, %v285
      %v289 = vmul.f32 %v252, %v282
      %v290 = vmul.f32 %v252, %v286
      %vm291 = vcmask 68608
      %292 = vst.msk [vmem:[%s246] sm:$0xf] %vm291, %v289
      %293 = vst.msk [vmem:[%s246 + $0x4] sm:$0xf] %vm291, %v290
      %v296 = vunpack.c.l.s4 1966171168
      %v297 = vunpack.c.0.s8 %v296
      %v298 = vlaneseq
      %v299 = vshrl.u32 %v298, 7
      %v300 = vsub.s32 %v297, %v299
      %v301 = vrot.slane %v255, %v300
      %v302 = vcombine.high %v301, %v301
      %v304 = vunpack.c.l.s4 1966171168
      %v305 = vunpack.c.0.s8 %v304
      %v306 = vlaneseq
      %v307 = vshrl.u32 %v306, 7
      %v308 = vsub.s32 %v305, %v307
      %v309 = vrot.slane %v301, %v308
      %v311 = vunpack.c.l.s4 1966171168
      %v312 = vunpack.c.0.s8 %v311
      %v313 = vlaneseq
      %v314 = vshrl.u32 %v313, 7
      %v315 = vsub.s32 %v312, %v314
      %v316 = vrot.slane %v302, %v315
      %v317 = vlaneseq
      %v318 = vshrl.u32 %v317, 7
      %v319 = vsub.s32 0, %v318
      %v320 = vrot.slane %v309, %v319
      %v321 = vlaneseq
      %v322 = vshrl.u32 %v321, 7
      %v323 = vsub.s32 0, %v322
      %v324 = vrot.slane %v316, %v323
      %v327 = vmul.f32 %v253, %v320
      %v328 = vmul.f32 %v253, %v324
      %329 = vst.msk [vmem:[%s251] sm:$0xf] %vm291, %v327
      %330 = vst.msk [vmem:[%s251 + $0x4] sm:$0xf] %vm291, %v328
      %p331 = scmp.lt.s32.totalorder %s17, 1
      %s332 = scalar_select %p331, %s17, 1
      %s333 = smul.addr %s332, 2
      %s334 = smul.addr %s333, 4
      %s335 = scalar_lea.vmem %s4, %s334
      %p336 = scmp.lt.s32.totalorder %s17, 1
      %s337 = scalar_select %p336, %s17, 1
      %s338 = smul.addr %s337, 2
      %s339 = smul.addr %s338, 4
      %s340 = scalar_lea.vmem %s5, %s339
      // Predicated region
      $region37: #{corr_eegminer_forward.3} parent=35 // pred_check
        %p341 = pneg %p129
      $region38: #{corr_eegminer_forward.3} parent=35 // pred_check_branch
        %343 = sbr.rel (%p341) target = $region40
      $region39: #{corr_eegminer_forward.3} parent=35 // pred_region
        _
      $region40: #{corr_eegminer_forward.3} parent=35 // pred_fallthru
        _
      // Predicated region
      $region41: #{corr_eegminer_forward.3} parent=35 // pred_check
        %p344 = pneg %p155
      $region42: #{corr_eegminer_forward.3} parent=35 // pred_check_branch
        %346 = sbr.rel (%p344) target = $region44
      $region43: #{corr_eegminer_forward.3} parent=35 // pred_region
        _
      $region44: #{corr_eegminer_forward.3} parent=35 // pred_fallthru
        _
    $region36: #{corr_eegminer_forward.3} parent=5 // pred_fallthru
      _
    %p347 = scmp.le.s32.totalorder 2, %s12
    // Predicated region
    $region45: #{corr_eegminer_forward.3} parent=5 // pred_check
      %p348 = pneg %p347
    $region46: #{corr_eegminer_forward.3} parent=5 // pred_check_branch
      %350 = sbr.rel (%p348) target = $region48
    $region47: #{corr_eegminer_forward.3} parent=5 // pred_region
      %s351 = ssub.s32 %s12, 2
      // Predicated region
      $region49: #{corr_eegminer_forward.3} parent=47 // pred_check
        %p352 = pneg %p135
      $region50: #{corr_eegminer_forward.3} parent=47 // pred_check_branch
        %354 = sbr.rel (%p352) target = $region52
      $region51: #{corr_eegminer_forward.3} parent=47 // pred_region
        %p355 = scmp.lt.s32.totalorder %s18, 1
        %s356 = scalar_select %p355, %s18, 1
        %s357 = smul.addr %s356, 2
        %s358 = smul.addr %s357, 4
        %s359 = scalar_lea.vmem %s4, %s358
      $region52: #{corr_eegminer_forward.3} parent=47 // pred_fallthru
        _
      // Predicated region
      $region53: #{corr_eegminer_forward.3} parent=47 // pred_check
        %p360 = pneg %p161
      $region54: #{corr_eegminer_forward.3} parent=47 // pred_check_branch
        %362 = sbr.rel (%p360) target = $region56
      $region55: #{corr_eegminer_forward.3} parent=47 // pred_region
        %p363 = scmp.lt.s32.totalorder %s18, 1
        %s364 = scalar_select %p363, %s18, 1
        %s365 = smul.addr %s364, 2
        %s366 = smul.addr %s365, 4
        %s367 = scalar_lea.vmem %s5, %s366
      $region56: #{corr_eegminer_forward.3} parent=47 // pred_fallthru
        _
    $region48: #{corr_eegminer_forward.3} parent=5 // pred_fallthru
      _
  $region6: #{corr_eegminer_forward.3} parent=0 // loop_footer
    %s16 = sadd.s32 1, %s12
  $region7: #{corr_eegminer_forward.3} parent=0 // loop_footer_branch
    %11 = sbr.rel target = $region3
  $region8: #{corr_eegminer_forward.3} parent=0 // loop_exit
    _

// kernel: corr_eegminer_forward.5
$region0: #{corr_eegminer_forward.5}
  #allocation0 [shape = 'u32[]', space=smem, size = 0x4, offset = 0x4, fixed_abs, tag = 'smem constant byte address 0x4 - core index']
  #allocation1 [shape = 'u32[144,128]{1,0:T(1,128)}', space=vmem, size = 0x12000, scoped, tag = 'internal scratch']
  %s0 = inlined_call_operand.vmem [shape: f32[2,12], index: 0, kind: input, shape index: {}]
  %s1 = inlined_call_operand.vmem [shape: f32[3,12], index: 1, kind: input, shape index: {}]
  %s2 = inlined_call_operand.vmem [shape: f32[1,3], index: 2, kind: input, shape index: {}]
  %s3 = inlined_call_operand.hbm [shape: f32[2,3], index: 3, kind: output, shape index: {}]
  %s4 = sld [smem:[#allocation0]]
  $region22: #{corr_eegminer_forward.5} parent=0
    _
  %s6 = ssub.s32 1, %s4
  %s7 = scalar_select 0, %s6, %s4
  $region1: #{corr_eegminer_forward.5} parent=0
    #allocation2 [shape = 'u8[1024]{0}', space=vmem, size = 0x400, scoped, tag = 'output window, operand 0, single buffered']
    #allocation3 [shape = 's32[1]{0}', space=sflag, size = 0x4, scoped, tag = 'scoped memory for corr_eegminer_forward.5']
    %8 = vsyncpa [#allocation3], 0
    // Predicated region
    $region2: #{corr_eegminer_forward.5} parent=1 // pred_check
      _
    $region3: #{corr_eegminer_forward.5} parent=1 // pred_check_branch
      %10 = sbr.rel (0) target = $region5
    $region4: #{corr_eegminer_forward.5} parent=1 // pred_region
      _
    $region5: #{corr_eegminer_forward.5} parent=1 // pred_fallthru
      _
    // Predicated region
    $region6: #{corr_eegminer_forward.5} parent=1 // pred_check
      _
    $region7: #{corr_eegminer_forward.5} parent=1 // pred_check_branch
      %12 = sbr.rel (0) target = $region9
    $region8: #{corr_eegminer_forward.5} parent=1 // pred_region
      _
    $region9: #{corr_eegminer_forward.5} parent=1 // pred_fallthru
      _
    // Predicated region
    $region10: #{corr_eegminer_forward.5} parent=1 // pred_check
      _
    $region11: #{corr_eegminer_forward.5} parent=1 // pred_check_branch
      %14 = sbr.rel (0) target = $region13
    $region12: #{corr_eegminer_forward.5} parent=1 // pred_region
      _
    $region13: #{corr_eegminer_forward.5} parent=1 // pred_fallthru
      _
    %v15 = vld [vmem:[%s0] sm:$0x3]
    %vm16 = vcmask 91136
    %v17 = vsel %vm16, %v15, 0.0
    %v18 = vrot.slane %v17, 4
    %v19 = vadd.f32 %v17, %v18
    %v20 = vrot.slane %v19, 2
    %v21 = vadd.f32 %v19, %v20
    %v22 = vrot.slane %v21, 1
    %v23 = vadd.f32 %v21, %v22
    %v24 = vrcp.pop 2.0
    %v25 = vmul.f32 %v23, %v24
    %v26 = vsub.f32 %v15, %v25
    %v27 = vmul.f32 %v26, %v26
    %v28 = vsel %vm16, %v27, 0.0
    %v29 = vrot.slane %v28, 4
    %v30 = vadd.f32 %v28, %v29
    %v31 = vrot.slane %v30, 2
    %v32 = vadd.f32 %v30, %v31
    %v33 = vrot.slane %v32, 1
    %v34 = vadd.f32 %v32, %v33
    %v35 = vmul.f32 %v34, %v24
    %v36 = vadd.f32 %v35, 1e-05
    %v37 = vrsqrt.pop %v36
    %v38 = vmul.f32 %v26, %v37
    %v39 = vld [vmem:[%s1] sm:$0x7]
    %v40 = vld [vmem:[%s2] sm:$0x1]
    %v42 = vlaneseq
    %v43 = vshrl.u32 %v42, 7
    %v44 = vsub.s32 0, %v43
    %v45 = vrot.slane %v40, %v44
    %vm47 = vcmask 97280
    %v49 = vsel %vm47, %v38, 0
    %v52 = vsel %vm47, %v39, 0
    %54 = vmatprep.subr.mxu0 0.0
    %55 = vmatpush1.xpose.msra.mxu0 %v52
    %56 = vmatprep.subr.mxu0 0.0
    %57 = vmatpush1.xpose.msra.mxu0 0.0
    %58 = vmatprep.subr.mxu0 0.0
    %59 = vmatpush1.xpose.msra.mxu0 0.0
    %60 = vmatprep.subr.mxu0 0.0
    %61 = vmatpush1.xpose.msra.mxu0 0.0
    %62 = vmatprep.subr.mxu0 0.0
    %63 = vmatpush1.xpose.msra.mxu0 0.0
    %64 = vmatprep.subr.mxu0 0.0
    %65 = vmatpush1.xpose.msra.mxu0 0.0
    %66 = vmatprep.subr.mxu0 0.0
    %67 = vmatpush1.xpose.msra.mxu0 0.0
    %68 = vmatprep.subr.mxu0 0.0
    %69 = vmatpush1.xpose.msra.mxu0 0.0
    %70 = vmatprep.subr.mxu0 0.0
    %71 = vmatpush1.xpose.msra.mxu0 0.0
    %72 = vmatprep.subr.mxu0 0.0
    %73 = vmatpush1.xpose.msra.mxu0 0.0
    %74 = vmatprep.subr.mxu0 0.0
    %75 = vmatpush1.xpose.msra.mxu0 0.0
    %76 = vmatprep.subr.mxu0 0.0
    %77 = vmatpush1.xpose.msra.mxu0 0.0
    %78 = vmatprep.subr.mxu0 0.0
    %79 = vmatpush1.xpose.msra.mxu0 0.0
    %80 = vmatprep.subr.mxu0 0.0
    %81 = vmatpush1.xpose.msra.mxu0 0.0
    %82 = vmatprep.subr.mxu0 0.0
    %83 = vmatpush1.xpose.msra.mxu0 0.0
    %84 = vmatprep.subr.mxu0 0.0
    %85 = vmatpush1.xpose.msra.mxu0 0.0
    %86 = vmatprep.subr.mxu0 0.0
    %87 = vmatpush1.xpose.msra.mxu0 0.0
    %88 = vmatprep.subr.mxu0 0.0
    %89 = vmatpush1.xpose.msra.mxu0 0.0
    %90 = vmatprep.subr.mxu0 0.0
    %91 = vmatpush1.xpose.msra.mxu0 0.0
    %92 = vmatprep.subr.mxu0 0.0
    %93 = vmatpush1.xpose.msra.mxu0 0.0
    %94 = vmatprep.subr.mxu0 0.0
    %95 = vmatpush1.xpose.msra.mxu0 0.0
    %96 = vmatprep.subr.mxu0 0.0
    %97 = vmatpush1.xpose.msra.mxu0 0.0
    %98 = vmatprep.subr.mxu0 0.0
    %99 = vmatpush1.xpose.msra.mxu0 0.0
    %100 = vmatprep.subr.mxu0 0.0
    %101 = vmatpush1.xpose.msra.mxu0 0.0
    %102 = vmatprep.subr.mxu0 0.0
    %103 = vmatpush1.xpose.msra.mxu0 0.0
    %104 = vmatprep.subr.mxu0 0.0
    %105 = vmatpush1.xpose.msra.mxu0 0.0
    %106 = vmatprep.subr.mxu0 0.0
    %107 = vmatpush1.xpose.msra.mxu0 0.0
    %108 = vmatprep.subr.mxu0 0.0
    %109 = vmatpush1.xpose.msra.mxu0 0.0
    %110 = vmatprep.subr.mxu0 0.0
    %111 = vmatpush1.xpose.msra.mxu0 0.0
    %112 = vmatprep.subr.mxu0 0.0
    %113 = vmatpush1.xpose.msra.mxu0 0.0
    %114 = vmatprep.subr.mxu0 0.0
    %115 = vmatpush1.xpose.msra.mxu0 0.0
    %116 = vmatprep.subr.mxu0 0.0
    %117 = vmatpush1.xpose.msra.mxu0 0.0
    %118 = vmatprep.mubr.f32.mxu0 0.0
    %119 = vmatmul.mubr.f32.gmra.mrb[0].mxu0 %v49
    %v120 = vpop.f32.mrb[0].mxu0
    %v121 = vadd.f32 %v45, %v120
    %v122 = vpop.f32.mrb[0].mxu0
    %123 = vdwg.mxu0
    %v124 = vxor.u32 %v121, 2147483648
    %v125 = vmul.f32 %v124, 1.442695
    %v126 = vpow.pop %v125
    %v127 = vadd.f32 %v126, 1.0
    %v128 = vrcp.pop %v127
    %v129 = vmul.f32 1.0, %v128
    %vm130 = vcmask 17408
    %131 = vst.msk [vmem:[#allocation2] sm:$0x3] %vm130, %v129
    // Predicated region
    $region14: #{corr_eegminer_forward.5} parent=1 // pred_check
      _
    $region15: #{corr_eegminer_forward.5} parent=1 // pred_check_branch
      %133 = sbr.rel (0) target = $region17
    $region16: #{corr_eegminer_forward.5} parent=1 // pred_region
      %s135 = ssub.s32 32, 32
      %136 = vsyncadd [#allocation3], %s135
      %s138 = sshll.u32 [#allocation2], 4
      %s139 = int_to_ptr.vmem [resolvable:$true] %s138
      %141 = dma.vmem_to_hbm [thread:$0]  %s139, 32, %s3, [#allocation3]
    $region17: #{corr_eegminer_forward.5} parent=1 // pred_fallthru
      _
    // Predicated region
    $region18: #{corr_eegminer_forward.5} parent=1 // pred_check
      _
    $region19: #{corr_eegminer_forward.5} parent=1 // pred_check_branch
      %143 = sbr.rel (0) target = $region21
    $region20: #{corr_eegminer_forward.5} parent=1 // pred_region
      %144 = dma.done [#allocation3], 32
    $region21: #{corr_eegminer_forward.5} parent=1 // pred_fallthru
      _
    %145 = vsyncpa [#allocation3], 1

// kernel: corr_eegminer_forward.4
$region0: #{corr_eegminer_forward.4}
  #allocation0 [shape = 'u32[]', space=smem, size = 0x4, offset = 0x4, fixed_abs, tag = 'smem constant byte address 0x4 - core index']
  #allocation1 [shape = 'u32[144,128]{1,0:T(1,128)}', space=vmem, size = 0x12000, scoped, tag = 'internal scratch']
  %s0 = inlined_call_operand.vmem [shape: f32[2,8,16], index: 0, kind: input, shape index: {}]
  %s1 = inlined_call_operand.vmem [shape: f32[8,12], index: 1, kind: input, shape index: {}]
  %s2 = inlined_call_operand.vmem [shape: f32[8,12], index: 2, kind: input, shape index: {}]
  %s3 = inlined_call_operand.vmem [shape: f32[2,1,12], index: 3, kind: output, shape index: {}]
  %s4 = sld [smem:[#allocation0]]
  $region45: #{corr_eegminer_forward.4} parent=0
    _
  %s6 = ssub.s32 1, %s4
  %s7 = scalar_select 0, %s6, %s4
  loop: start=0, step=1, limit=4
  $region2: #{corr_eegminer_forward.4} parent=0 // loop_pre_header
    _
  $region3: #{corr_eegminer_forward.4} parent=0 // loop_header
    %s9 = sphi 0, %s13
    %p10 = scmp.ge.s32.totalorder %s9, 4
    %s19 = sphi 0, %s21
    %s22 = sphi 0, %s19
    %s23 = sphi 0, %s22
    %s39 = sphi 0, %s23
    %s43 = sphi 0, %s43
    %s45 = sphi 0, %s43
    %s46 = sphi 0, %s45
    %s60 = sphi 0, %s46
    %s64 = sphi 0, %s64
    %s66 = sphi 0, %s64
    %s67 = sphi 0, %s66
    %s81 = sphi 0, %s67
    %s87 = sphi 0, %s89
    %s90 = sphi 0, %s87
    %s91 = sphi 0, %s90
    %s107 = sphi 0, %s91
  $region4: #{corr_eegminer_forward.4} parent=0 // loop_header_branch
    %12 = sbr.rel (%p10) target = $region8
  $region5: #{corr_eegminer_forward.4} parent=0 // loop_body
    %s14 = ssub.s32 %s9, 1
    %s15 = ssub.s32 %s9, 2
    %s16 = sadd.s32 %s9, 1
    %s17 = ssub.s32 %s9, %s16
    %p18 = scmp.eq.s32.totalorder %s17, 0
    %s20 = sadd.s32 %s19, 1
    %s21 = scalar_select %p18, %s19, %s20
    %p24 = pneg %p18
    %p25 = scmp.eq.s32.totalorder %s9, 1
    %p26 = por %p24, %p25
    %p27 = scmp.ne.s32.totalorder %s19, %s22
    %p28 = scmp.eq.s32.totalorder %s9, 0
    %p29 = por %p27, %p28
    %p30 = scmp.ne.s32.totalorder %s19, %s22
    %p31 = scmp.eq.s32.totalorder %s14, 1
    %p32 = por %p30, %p31
    %p33 = scmp.ne.s32.totalorder %s22, %s23
    %p34 = scmp.eq.s32.totalorder %s14, 0
    %p35 = por %p33, %p34
    %p36 = scmp.ne.s32.totalorder %s22, %s23
    %p37 = scmp.eq.s32.totalorder %s15, 1
    %p38 = por %p36, %p37
    %p40 = scmp.ne.s32.totalorder %s23, %s39
    %p41 = scmp.eq.s32.totalorder %s15, 0
    %p42 = por %p40, %p41
    %s44 = sadd.s32 %s43, 1
    %p47 = scmp.eq.s32.totalorder %s9, 1
    %p48 = scmp.ne.s32.totalorder %s43, %s45
    %p49 = scmp.eq.s32.totalorder %s9, 0
    %p50 = por %p48, %p49
    %p51 = scmp.ne.s32.totalorder %s43, %s45
    %p52 = scmp.eq.s32.totalorder %s14, 1
    %p53 = por %p51, %p52
    %p54 = scmp.ne.s32.totalorder %s45, %s46
    %p55 = scmp.eq.s32.totalorder %s14, 0
    %p56 = por %p54, %p55
    %p57 = scmp.ne.s32.totalorder %s45, %s46
    %p58 = scmp.eq.s32.totalorder %s15, 1
    %p59 = por %p57, %p58
    %p61 = scmp.ne.s32.totalorder %s46, %s60
    %p62 = scmp.eq.s32.totalorder %s15, 0
    %p63 = por %p61, %p62
    %s65 = sadd.s32 %s64, 1
    %p68 = scmp.eq.s32.totalorder %s9, 1
    %p69 = scmp.ne.s32.totalorder %s64, %s66
    %p70 = scmp.eq.s32.totalorder %s9, 0
    %p71 = por %p69, %p70
    %p72 = scmp.ne.s32.totalorder %s64, %s66
    %p73 = scmp.eq.s32.totalorder %s14, 1
    %p74 = por %p72, %p73
    %p75 = scmp.ne.s32.totalorder %s66, %s67
    %p76 = scmp.eq.s32.totalorder %s14, 0
    %p77 = por %p75, %p76
    %p78 = scmp.ne.s32.totalorder %s66, %s67
    %p79 = scmp.eq.s32.totalorder %s15, 1
    %p80 = por %p78, %p79
    %p82 = scmp.ne.s32.totalorder %s67, %s81
    %p83 = scmp.eq.s32.totalorder %s15, 0
    %p84 = por %p82, %p83
    %s85 = ssub.s32 %s9, %s16
    %p86 = scmp.eq.s32.totalorder %s85, 0
    %s88 = sadd.s32 %s87, 1
    %s89 = scalar_select %p86, %s87, %s88
    %p92 = pneg %p86
    %p93 = scmp.eq.s32.totalorder %s9, 1
    %p94 = por %p92, %p93
    %p95 = scmp.ne.s32.totalorder %s87, %s90
    %p96 = scmp.eq.s32.totalorder %s9, 0
    %p97 = por %p95, %p96
    %p98 = scmp.ne.s32.totalorder %s87, %s90
    %p99 = scmp.eq.s32.totalorder %s14, 1
    %p100 = por %p98, %p99
    %p101 = scmp.ne.s32.totalorder %s90, %s91
    %p102 = scmp.eq.s32.totalorder %s14, 0
    %p103 = por %p101, %p102
    %p104 = scmp.ne.s32.totalorder %s90, %s91
    %p105 = scmp.eq.s32.totalorder %s15, 1
    %p106 = por %p104, %p105
    %p108 = scmp.ne.s32.totalorder %s91, %s107
    %p109 = scmp.eq.s32.totalorder %s15, 0
    %p110 = por %p108, %p109
    %p111 = scmp.le.s32.totalorder 1, %s9
    %p112 = scmp.lt.s32.totalorder %s9, 3
    %p113 = pnand %p111, %p112
    %p114 = pneg %p113
    // Predicated region
    $region9: #{corr_eegminer_forward.4} parent=5 // pred_check
      _
    $region10: #{corr_eegminer_forward.4} parent=5 // pred_check_branch
      %116 = sbr.rel (%p113) target = $region12
    $region11: #{corr_eegminer_forward.4} parent=5 // pred_region
      %s117 = ssub.s32 %s9, 1
      // Predicated region
      $region13: #{corr_eegminer_forward.4} parent=11 // pred_check
        %p118 = pneg %p56
      $region14: #{corr_eegminer_forward.4} parent=11 // pred_check_branch
        %120 = sbr.rel (%p118) target = $region16
      $region15: #{corr_eegminer_forward.4} parent=11 // pred_region
        _
      $region16: #{corr_eegminer_forward.4} parent=11 // pred_fallthru
        _
      // Predicated region
      $region17: #{corr_eegminer_forward.4} parent=11 // pred_check
        %p121 = pneg %p77
      $region18: #{corr_eegminer_forward.4} parent=11 // pred_check_branch
        %123 = sbr.rel (%p121) target = $region20
      $region19: #{corr_eegminer_forward.4} parent=11 // pred_region
        _
      $region20: #{corr_eegminer_forward.4} parent=11 // pred_fallthru
        _
    $region12: #{corr_eegminer_forward.4} parent=5 // pred_fallthru
      _
    %p124 = scmp.lt.s32.totalorder %s9, 2
    // Predicated region
    $region21: #{corr_eegminer_forward.4} parent=5 // pred_check
      %p125 = pneg %p124
    $region22: #{corr_eegminer_forward.4} parent=5 // pred_check_branch
      %127 = sbr.rel (%p125) target = $region24
    $region23: #{corr_eegminer_forward.4} parent=5 // pred_region
      // Predicated region
      $region25: #{corr_eegminer_forward.4} parent=23 // pred_check
        %p128 = pneg %p29
      $region26: #{corr_eegminer_forward.4} parent=23 // pred_check_branch
        %130 = sbr.rel (%p128) target = $region28
      $region27: #{corr_eegminer_forward.4} parent=23 // pred_region
        %p131 = scmp.lt.s32.totalorder %s9, 1
        %s132 = scalar_select %p131, %s9, 1
        %s133 = smul.addr %s132, 8
        %s134 = scalar_lea.vmem %s0, %s133
      $region28: #{corr_eegminer_forward.4} parent=23 // pred_fallthru
        _
    $region24: #{corr_eegminer_forward.4} parent=5 // pred_fallthru
      _
    %p135 = scmp.le.s32.totalorder 1, %s9
    %p136 = scmp.lt.s32.totalorder %s9, 3
    %p137 = pnand %p135, %p136
    %p138 = pneg %p137
    // Predicated region
    $region29: #{corr_eegminer_forward.4} parent=5 // pred_check
      _
    $region30: #{corr_eegminer_forward.4} parent=5 // pred_check_branch
      %140 = sbr.rel (%p137) target = $region32
    $region31: #{corr_eegminer_forward.4} parent=5 // pred_region
      %s141 = ssub.s32 %s9, 1
      %p142 = scmp.lt.s32.totalorder %s14, 1
      %s143 = scalar_select %p142, %s14, 1
      %s144 = smul.addr %s143, 8
      %s145 = scalar_lea.vmem %s0, %s144
      %p146 = pneg %p35
      %p147 = pneg %p32
      %p148 = pneg %p56
      %p149 = pneg %p53
      %p150 = pneg %p77
      %p151 = pneg %p74
      %p152 = pneg %p103
      %p153 = pneg %p100
      %p154 = scmp.lt.s32.totalorder %s14, 1
      %s155 = scalar_select %p154, %s14, 1
      %s156 = scalar_lea.vmem %s3, %s155
      %p157 = scmp.lt.s32.totalorder %s14, 1
      %s158 = scalar_select %p157, %s14, 1
      %s159 = smul.addr %s158, 8
      %s160 = scalar_lea.vmem %s0, %s159
      %p161 = scmp.lt.s32.totalorder %s14, 1
      %s162 = scalar_select %p161, %s14, 1
      %s163 = scalar_lea.vmem %s3, %s162
      %v165 = vld [vmem:[%s160] sm:$0xff]
      %vm166 = vcmask 130048
      %v167 = vsel %vm166, %v165, 0.0
      %168 = vadd.xlane.f32.xlu0 %v167
      %v169 = vpop.xlane.xlu0 %168
      %v170 = vrcp.pop 16.0
      %v171 = vmul.f32 %v169, %v170
      %v172 = vsub.f32 %v165, %v171
      %v173 = vmul.f32 %v172, %v172
      %v174 = vsel %vm166, %v173, 0.0
      %175 = vadd.xlane.f32.xlu0 %v174
      %v176 = vpop.xlane.xlu0 %175
      %v177 = vmul.f32 %v176, 0.06666667
      %v178 = vadd.f32 %v177, 1e-06
      %v179 = vrsqrt.pop %v178
      %v180 = vpack.c.bf16 %v172, %v172
      %v182 = vsel %vm166, %v180, 0
      %184 = vmatprep.subr.bf16.mxu0 0
      %185 = vmatpush1.bf16.xpose.msra.mxu0 %v182
      %186 = vmatprep.subr.bf16.mxu0 0
      %187 = vmatpush1.bf16.xpose.msra.mxu0 0
      %188 = vmatprep.subr.bf16.mxu0 0
      %189 = vmatpush1.bf16.xpose.msra.mxu0 0
      %190 = vmatprep.subr.bf16.mxu0 0
      %191 = vmatpush1.bf16.xpose.msra.mxu0 0
      %192 = vmatprep.subr.bf16.mxu0 0
      %193 = vmatpush1.bf16.xpose.msra.mxu0 0
      %194 = vmatprep.subr.bf16.mxu0 0
      %195 = vmatpush1.bf16.xpose.msra.mxu0 0
      %196 = vmatprep.subr.bf16.mxu0 0
      %197 = vmatpush1.bf16.xpose.msra.mxu0 0
      %198 = vmatprep.subr.bf16.mxu0 0
      %199 = vmatpush1.bf16.xpose.msra.mxu0 0
      %200 = vmatprep.subr.bf16.mxu0 0
      %201 = vmatpush1.bf16.xpose.msra.mxu0 0
      %202 = vmatprep.subr.bf16.mxu0 0
      %203 = vmatpush1.bf16.xpose.msra.mxu0 0
      %204 = vmatprep.subr.bf16.mxu0 0
      %205 = vmatpush1.bf16.xpose.msra.mxu0 0
      %206 = vmatprep.subr.bf16.mxu0 0
      %207 = vmatpush1.bf16.xpose.msra.mxu0 0
      %208 = vmatprep.subr.bf16.mxu0 0
      %209 = vmatpush1.bf16.xpose.msra.mxu0 0
      %210 = vmatprep.subr.bf16.mxu0 0
      %211 = vmatpush1.bf16.xpose.msra.mxu0 0
      %212 = vmatprep.subr.bf16.mxu0 0
      %213 = vmatpush1.bf16.xpose.msra.mxu0 0
      %214 = vmatprep.subr.bf16.mxu0 0
      %215 = vmatpush1.bf16.xpose.msra.mxu0 0
      %216 = vmatprep.mubr.bf16.mxu0 0
      %217 = vmatmul.mubr.bf16.gmra.mrb[0].mxu0 %v182
      %v218 = vpop.f32.mrb[0].mxu0
      %v219 = vadd.f32 0.0, %v218
      %v220 = vpop.f32.mrb[0].mxu0
      %v221 = vpop.f32.mrb[0].mxu0
      %v222 = vpop.f32.mrb[0].mxu0
      %223 = vdwg.mxu0
      %v224 = vld [vmem:[%s1] sm:$0xff]
      %v225 = vld [vmem:[%s2] sm:$0xff]
      %vm226 = vcmask 64512
      %v228 = vsel %vm226, %v219, 0
      %230 = vmatprep.subr.mxu0 0.0
      %231 = vmatpush1.msra.mxu0 %v225
      %232 = vmatprep.subr.mxu0 0.0
      %233 = vmatpush1.msra.mxu0 0.0
      %234 = vmatprep.subr.mxu0 0.0
      %235 = vmatpush1.msra.mxu0 0.0
      %236 = vmatprep.subr.mxu0 0.0
      %237 = vmatpush1.msra.mxu0 0.0
      %238 = vmatprep.subr.mxu0 0.0
      %239 = vmatpush1.msra.mxu0 0.0
      %240 = vmatprep.subr.mxu0 0.0
      %241 = vmatpush1.msra.mxu0 0.0
      %242 = vmatprep.subr.mxu0 0.0
      %243 = vmatpush1.msra.mxu0 0.0
      %244 = vmatprep.subr.mxu0 0.0
      %245 = vmatpush1.msra.mxu0 0.0
      %246 = vmatprep.subr.mxu0 0.0
      %247 = vmatpush1.msra.mxu0 0.0
      %248 = vmatprep.subr.mxu0 0.0
      %249 = vmatpush1.msra.mxu0 0.0
      %250 = vmatprep.subr.mxu0 0.0
      %251 = vmatpush1.msra.mxu0 0.0
      %252 = vmatprep.subr.mxu0 0.0
      %253 = vmatpush1.msra.mxu0 0.0
      %254 = vmatprep.subr.mxu0 0.0
      %255 = vmatpush1.msra.mxu0 0.0
      %256 = vmatprep.subr.mxu0 0.0
      %257 = vmatpush1.msra.mxu0 0.0
      %258 = vmatprep.subr.mxu0 0.0
      %259 = vmatpush1.msra.mxu0 0.0
      %260 = vmatprep.subr.mxu0 0.0
      %261 = vmatpush1.msra.mxu0 0.0
      %262 = vmatprep.subr.mxu0 0.0
      %263 = vmatpush1.msra.mxu0 0.0
      %264 = vmatprep.subr.mxu0 0.0
      %265 = vmatpush1.msra.mxu0 0.0
      %266 = vmatprep.subr.mxu0 0.0
      %267 = vmatpush1.msra.mxu0 0.0
      %268 = vmatprep.subr.mxu0 0.0
      %269 = vmatpush1.msra.mxu0 0.0
      %270 = vmatprep.subr.mxu0 0.0
      %271 = vmatpush1.msra.mxu0 0.0
      %272 = vmatprep.subr.mxu0 0.0
      %273 = vmatpush1.msra.mxu0 0.0
      %274 = vmatprep.subr.mxu0 0.0
      %275 = vmatpush1.msra.mxu0 0.0
      %276 = vmatprep.subr.mxu0 0.0
      %277 = vmatpush1.msra.mxu0 0.0
      %278 = vmatprep.subr.mxu0 0.0
      %279 = vmatpush1.msra.mxu0 0.0
      %280 = vmatprep.subr.mxu0 0.0
      %281 = vmatpush1.msra.mxu0 0.0
      %282 = vmatprep.subr.mxu0 0.0
      %283 = vmatpush1.msra.mxu0 0.0
      %284 = vmatprep.subr.mxu0 0.0
      %285 = vmatpush1.msra.mxu0 0.0
      %286 = vmatprep.subr.mxu0 0.0
      %287 = vmatpush1.msra.mxu0 0.0
      %288 = vmatprep.subr.mxu0 0.0
      %289 = vmatpush1.msra.mxu0 0.0
      %290 = vmatprep.subr.mxu0 0.0
      %291 = vmatpush1.msra.mxu0 0.0
      %292 = vmatprep.subr.mxu0 0.0
      %293 = vmatpush1.msra.mxu0 0.0
      %294 = vmatprep.mubr.f32.mxu0 0.0
      %295 = vmatmul.mubr.f32.gmra.mrb[0].mxu0 %v228
      %v296 = vpop.f32.mrb[0].mxu0
      %v297 = vadd.f32 0.0, %v296
      %v298 = vpop.f32.mrb[0].mxu0
      %299 = vdwg.mxu0
      %v300 = vmul.f32 %v224, %v297
      %vm301 = vcmask 97280
      %v302 = vsel %vm301, %v300, 0.0
      %v303 = vrot.slane %v302, 4
      %v304 = vadd.f32 %v302, %v303
      %v305 = vrot.slane %v304, 2
      %v306 = vadd.f32 %v304, %v305
      %v307 = vrot.slane %v306, 1
      %v308 = vadd.f32 %v306, %v307
      %v309 = vmul.f32 %v224, %v179
      %v310 = vsel %vm301, %v309, 0.0
      %v311 = vrot.slane %v310, 4
      %v312 = vadd.f32 %v310, %v311
      %v313 = vrot.slane %v312, 2
      %v314 = vadd.f32 %v312, %v313
      %v315 = vrot.slane %v314, 1
      %v316 = vadd.f32 %v314, %v315
      %v317 = vmul.f32 %v225, %v179
      %v318 = vsel %vm301, %v317, 0.0
      %v319 = vrot.slane %v318, 4
      %v320 = vadd.f32 %v318, %v319
      %v321 = vrot.slane %v320, 2
      %v322 = vadd.f32 %v320, %v321
      %v323 = vrot.slane %v322, 1
      %v324 = vadd.f32 %v322, %v323
      %v325 = vand.u32 2147483647, %v308
      %v326 = vmul.f32 %v325, %v316
      %v327 = vmul.f32 %v326, %v324
      %v328 = vmul.f32 %v327, 0.0625
      %vm329 = vcmask 90112
      %330 = vst.msk [vmem:[%s163] sm:$0x1] %vm329, %v328
      %p331 = scmp.lt.s32.totalorder %s14, 1
      %s332 = scalar_select %p331, %s14, 1
      %s333 = scalar_lea.vmem %s3, %s332
      // Predicated region
      $region33: #{corr_eegminer_forward.4} parent=31 // pred_check
        %p334 = pneg %p100
      $region34: #{corr_eegminer_forward.4} parent=31 // pred_check_branch
        %336 = sbr.rel (%p334) target = $region36
      $region35: #{corr_eegminer_forward.4} parent=31 // pred_region
        _
      $region36: #{corr_eegminer_forward.4} parent=31 // pred_fallthru
        _
    $region32: #{corr_eegminer_forward.4} parent=5 // pred_fallthru
      _
    %p337 = scmp.le.s32.totalorder 2, %s9
    // Predicated region
    $region37: #{corr_eegminer_forward.4} parent=5 // pred_check
      %p338 = pneg %p337
    $region38: #{corr_eegminer_forward.4} parent=5 // pred_check_branch
      %340 = sbr.rel (%p338) target = $region40
    $region39: #{corr_eegminer_forward.4} parent=5 // pred_region
      %s341 = ssub.s32 %s9, 2
      // Predicated region
      $region41: #{corr_eegminer_forward.4} parent=39 // pred_check
        %p342 = pneg %p106
      $region42: #{corr_eegminer_forward.4} parent=39 // pred_check_branch
        %344 = sbr.rel (%p342) target = $region44
      $region43: #{corr_eegminer_forward.4} parent=39 // pred_region
        %p345 = scmp.lt.s32.totalorder %s15, 1
        %s346 = scalar_select %p345, %s15, 1
        %s347 = scalar_lea.vmem %s3, %s346
      $region44: #{corr_eegminer_forward.4} parent=39 // pred_fallthru
        _
    $region40: #{corr_eegminer_forward.4} parent=5 // pred_fallthru
      _
  $region6: #{corr_eegminer_forward.4} parent=0 // loop_footer
    %s13 = sadd.s32 1, %s9
  $region7: #{corr_eegminer_forward.4} parent=0 // loop_footer_branch
    %8 = sbr.rel target = $region3
  $region8: #{corr_eegminer_forward.4} parent=0 // loop_exit
    _

</llo_original>
